<compile_context>
chip_gen: v5e
topology: v5e:2x2
jax: 0.10.0
libtpu: 0.0.40
codegen_flags: <defaults>
</compile_context>

<pallas_src>
import functools

import jax
import jax.numpy as jnp
from jax import lax
from jax.experimental import pallas as pl
from jax.experimental.pallas import tpu as pltpu


_FREEZE = 1.0e9   # added to the z-gate pre-activation of invalid timesteps


def _round_up(x, m):
    return (x + m - 1) // m * m


# ----------------------------------------------------------------------------
# Shared GRU cell.  gi already contains x@W_ih + b_ih + (b_hr, b_hz, 0) and
# the packed-seq freeze bump on the z gate.  Only h@W_hh (bf16 MXU, f32 acc)
# and the n-gate hidden bias remain inside.  H == Hp (128-aligned), so the
# three gate slices are whole-vreg selects.
# ----------------------------------------------------------------------------
def _gru_cell(h, gi, whh_bf16, bhh_n, H):
    gh = jnp.dot(h.astype(jnp.bfloat16), whh_bf16,
                 preferred_element_type=jnp.float32)          # (B, 3H) f32
    r = jax.nn.sigmoid(gi[:, 0:H] + gh[:, 0:H])
    z = jax.nn.sigmoid(gi[:, H:2 * H] + gh[:, H:2 * H])
    n = jnp.tanh(gi[:, 2 * H:3 * H] + r * (gh[:, 2 * H:3 * H] + bhh_n))
    return (1.0 - z) * n + z * h


# ----------------------------------------------------------------------------
# One GRU direction per grid step (grid=(2,), "parallel" -> one per TC on v7x).
# The backward direction's gi slab is pre-reversed in time in the wrapper, so
# both directions run the identical forward loop.
# ----------------------------------------------------------------------------
def _gru_dir_kernel(gi_ref, whh_ref, bhhn_ref, out_ref, *, T, H):
    whh = whh_ref[...]                                       # hoisted (H,3H) bf16
    B = out_ref.shape[0]
    bhh_n = jnp.broadcast_to(bhhn_ref[...], (B, H))          # hoisted broadcast
    h0 = jnp.zeros((B, H), jnp.float32)

    def body(t, h):
        return _gru_cell(h, gi_ref[t], whh, bhh_n, H)

    h = lax.fori_loop(0, T, body, h0, unroll=min(T, 8))
    out_ref[...] = h


def bigru_encode(gi_stacked, whh_stacked, bhhn_stacked):
    _, T, Bp, G3 = gi_stacked.shape
    Hp = G3 // 3
    kern = functools.partial(_gru_dir_kernel, T=T, H=Hp)
    out = pl.pallas_call(
        kern,
        grid=(2,),
        in_specs=[
            pl.BlockSpec((None, T, Bp, 3 * Hp), lambda d: (d, 0, 0, 0)),
            pl.BlockSpec((None, Hp, 3 * Hp), lambda d: (d, 0, 0)),
            pl.BlockSpec((None, 1, Hp), lambda d: (d, 0, 0)),
        ],
        out_specs=pl.BlockSpec((None, Bp, Hp), lambda d: (d, 0, 0)),
        out_shape=jax.ShapeDtypeStruct((2, Bp, Hp), jnp.float32),
        compiler_params=pltpu.CompilerParams(
            dimension_semantics=("parallel",)),
    )(gi_stacked, whh_stacked, bhhn_stacked)
    return out[0] + out[1]                                    # hf + hb


# ----------------------------------------------------------------------------
# Fused context GRU + classifier kernel.  The frozen loop-carried h equals the
# last valid context state, so the MLP runs directly on it:
#   Linear -> LeakyReLU -> Linear -> LeakyReLU -> (VPU dot) -> sigmoid
# ----------------------------------------------------------------------------
def _ctx_clf_kernel(gi_ref, whh_ref, bhhn_ref,
                    w1_ref, b1_ref, w2_ref, b2_ref, w3t_ref, b3_ref,
                    o_ref, *, T, H):
    whh = whh_ref[...]
    B = o_ref.shape[0]
    bhh_n = jnp.broadcast_to(bhhn_ref[...], (B, H))
    h0 = jnp.zeros((B, H), jnp.float32)

    def body(t, h):
        return _gru_cell(h, gi_ref[t], whh, bhh_n, H)

    h = lax.fori_loop(0, T, body, h0, unroll=min(T, 8))

    h1 = jnp.dot(h, w1_ref[...], preferred_element_type=jnp.float32) + b1_ref[...]
    h1 = jnp.where(h1 > 0, h1, 0.01 * h1)                    # LeakyReLU(0.01)
    h2 = jnp.dot(h1, w2_ref[...], preferred_element_type=jnp.float32) + b2_ref[...]
    h2 = jnp.where(h2 > 0, h2, 0.01 * h2)
    logit = jnp.sum(h2 * w3t_ref[...], axis=-1, keepdims=True) + b3_ref[...]
    o_ref[...] = jax.nn.sigmoid(logit)


def context_and_classify(gi_ctx, kp):
    T, Bd, G3 = gi_ctx.shape
    Hp = G3 // 3
    kern = functools.partial(_ctx_clf_kernel, T=T, H=Hp)
    return pl.pallas_call(
        kern,
        out_shape=jax.ShapeDtypeStruct((Bd, 1), jnp.float32),
    )(gi_ctx, kp["ctx_whh"], kp["ctx_bhhn"],
      kp["clf_w1"], kp["clf_b1"], kp["clf_w2"], kp["clf_b2"],
      kp["clf_w3t"], kp["clf_b3"])


# ----------------------------------------------------------------------------
# XLA-side precompute: input gates (bf16 MXU, f32 acc) and packed-seq freeze
# bump folded into the z-gate pre-activation (z -> 1 exactly => h frozen).
# ----------------------------------------------------------------------------
def _input_gates(x, wih_bf16, bias_f32):
    T, B, K = x.shape
    gi = jnp.dot(x.reshape(T * B, K).astype(jnp.bfloat16), wih_bf16,
                 preferred_element_type=jnp.float32) + bias_f32
    return gi.reshape(T, B, -1)


def _freeze_mask(gi, lengths, Hp):
    T, B, _ = gi.shape
    invalid = jnp.arange(T, dtype=jnp.int32)[:, None] >= lengths[None, :]
    bump = jnp.where(invalid, jnp.float32(_FREEZE), jnp.float32(0.0))[:, :, None]
    bump = jnp.broadcast_to(bump, (T, B, Hp))
    z = gi[:, :, Hp:2 * Hp] + bump
    return jnp.concatenate([gi[:, :, :Hp], z, gi[:, :, 2 * Hp:]], axis=-1)


# ----------------------------------------------------------------------------
# Predictor forward pass (glue in plain JAX, hot recurrent paths in Pallas)
# ----------------------------------------------------------------------------
def predictor_forward(kp, input_batch, dialog_lengths, dialog_lengths_list,
                      utt_lengths, batch_indices, dialog_indices,
                      batch_size, max_length):
    H, Hp = kp["H"], kp["Hp"]
    T, n_utts = input_batch.shape
    Bu = _round_up(n_utts, 8)
    Bd = _round_up(batch_size, 8)

    # --- utterance encoder: embedding + 1-layer bidirectional GRU ---
    emb = jnp.take(kp["embedding"], input_batch, axis=0)          # (T, n_utts, H)
    emb = jnp.pad(emb, ((0, 0), (0, Bu - n_utts), (0, 0)))
    utt_len_p = jnp.pad(utt_lengths.astype(jnp.int32), (0, Bu - n_utts))

    gi_cat = _input_gates(emb, kp["enc_wih_cat"], kp["enc_bias_cat"])  # (T,Bu,6Hp)
    gi_f = _freeze_mask(gi_cat[..., :3 * Hp], utt_len_p, Hp)
    gi_b = _freeze_mask(gi_cat[..., 3 * Hp:], utt_len_p, Hp)[::-1]     # time-reversed
    gi_stacked = jnp.stack([gi_f, gi_b], axis=0)                       # (2,T,Bu,3Hp)

    summed = bigru_encode(gi_stacked, kp["enc_whh"], kp["enc_bhhn"])   # (Bu, Hp)

    # --- makeContextEncoderInput: regroup utterance states by dialog ---
    max_dlg = max(dialog_lengths_list)
    ctx_in = jnp.zeros((max_dlg, Bd, Hp), jnp.float32)
    ctx_in = ctx_in.at[dialog_indices, batch_indices].set(summed[:n_utts])

    # --- context GRU + classifier MLP + sigmoid (single fused kernel) ---
    dlg_len_p = jnp.pad(dialog_lengths.astype(jnp.int32), (0, Bd - batch_size))
    gi_ctx = _input_gates(ctx_in, kp["ctx_wih"], kp["ctx_bias"])
    gi_ctx = _freeze_mask(gi_ctx, dlg_len_p, Hp)

    preds = context_and_classify(gi_ctx, kp)                           # (Bd, 1)
    return preds[:batch_size, 0]


# ----------------------------------------------------------------------------
# Deterministic parameter init (logical PyTorch-layout params; synthetic).
# Fused gate layout: W_ih (Hin, 3H), W_hh (H, 3H), biases (1, 3H), order (r,z,n).
# ----------------------------------------------------------------------------
def _uniform(key, shape, k):
    return jax.random.uniform(key, shape, jnp.float32, -k, k)


def init_gru_params(key, h_in, h):
    k = 1.0 / float(h) ** 0.5
    k1, k2, k3, k4 = jax.random.split(key, 4)
    return {"wih": _uniform(k1, (h_in, 3 * h), k),
            "whh": _uniform(k2, (h, 3 * h), k),
            "bih": _uniform(k3, (1, 3 * h), k),
            "bhh": _uniform(k4, (1, 3 * h), k)}


def init_params(key, hidden_size, vocab_size):
    ks = jax.random.split(key, 8)
    k1 = 1.0 / float(hidden_size) ** 0.5
    return {
        "hidden_size": hidden_size,
        "embedding": 0.1 * jax.random.normal(ks[0], (vocab_size, hidden_size), jnp.float32),
        "enc_f": init_gru_params(ks[1], hidden_size, hidden_size),
        "enc_b": init_gru_params(ks[2], hidden_size, hidden_size),
        "ctx": init_gru_params(ks[3], hidden_size, hidden_size),
        "clf": {
            "w1": _uniform(ks[4], (hidden_size, hidden_size), k1),
            "b1": jnp.zeros((1, hidden_size), jnp.float32),
            "w2": _uniform(ks[5], (hidden_size, hidden_size // 2), k1),
            "b2": jnp.zeros((1, hidden_size // 2), jnp.float32),
            "w3t": _uniform(ks[6], (1, hidden_size // 2), k1),
            "b3": jnp.zeros((1, 1), jnp.float32),
        },
    }


# ----------------------------------------------------------------------------
# Kernel-ready parameters: 128-per-gate padding (zero-filled), bih + bhh_{r,z}
# folding, fwd/bwd W_ih fusion, bf16 matmul weights.
# ----------------------------------------------------------------------------
def prepare_params(p):
    H = p["hidden_size"]
    Hp = _round_up(H, 128)

    def pad_gate_cols(w):                       # (..., 3H) -> (..., 3Hp), zero pad
        parts = []
        for g in range(3):
            blk = w[..., g * H:(g + 1) * H]
            parts.append(jnp.pad(blk, [(0, 0)] * (w.ndim - 1) + [(0, Hp - H)]))
        return jnp.concatenate(parts, axis=-1)

    def gru_kernel_weights(g, pad_rows_to=None):
        wih = g["wih"]
        if pad_rows_to is not None:
            wih = jnp.pad(wih, ((0, pad_rows_to - wih.shape[0]), (0, 0)))
        wih_p = pad_gate_cols(wih)
        bias = g["bih"].at[:, :2 * H].add(g["bhh"][:, :2 * H])    # fold bhh_r, bhh_z
        bias_p = pad_gate_cols(bias)
        whh_p = pad_gate_cols(jnp.pad(g["whh"], ((0, Hp - H), (0, 0))))
        bhhn_p = jnp.pad(g["bhh"][:, 2 * H:3 * H], ((0, 0), (0, Hp - H)))
        return wih_p, bias_p, whh_p, bhhn_p

    f_wih, f_bias, f_whh, f_bhhn = gru_kernel_weights(p["enc_f"])
    b_wih, b_bias, b_whh, b_bhhn = gru_kernel_weights(p["enc_b"])
    c_wih, c_bias, c_whh, c_bhhn = gru_kernel_weights(p["ctx"], pad_rows_to=Hp)

    clf = p["clf"]
    H2 = clf["w2"].shape[1]
    Hp2 = _round_up(H2, 128)
    w1 = jnp.zeros((Hp, Hp), jnp.float32).at[:H, :H].set(clf["w1"])
    b1 = jnp.pad(clf["b1"], ((0, 0), (0, Hp - H)))
    w2 = jnp.zeros((Hp, Hp2), jnp.float32).at[:H, :H2].set(clf["w2"])
    b2 = jnp.pad(clf["b2"], ((0, 0), (0, Hp2 - H2)))
    w3t = jnp.pad(clf["w3t"], ((0, 0), (0, Hp2 - H2)))

    return {
        "H": H, "Hp": Hp,
        "embedding": p["embedding"],
        # fused fwd+bwd input projection: one (Hin, 6*Hp) bf16 matmul
        "enc_wih_cat": jnp.concatenate([f_wih, b_wih], axis=-1).astype(jnp.bfloat16),
        "enc_bias_cat": jnp.concatenate([f_bias, b_bias], axis=-1),
        "enc_whh": jnp.stack([f_whh, b_whh]).astype(jnp.bfloat16),   # (2, Hp, 3Hp)
        "enc_bhhn": jnp.stack([f_bhhn, b_bhhn]),                     # (2, 1, Hp)
        "ctx_wih": c_wih.astype(jnp.bfloat16),
        "ctx_bias": c_bias,
        "ctx_whh": c_whh.astype(jnp.bfloat16),
        "ctx_bhhn": c_bhhn,
        "clf_w1": w1, "clf_b1": b1, "clf_w2": w2, "clf_b2": b2,
        "clf_w3t": w3t, "clf_b3": clf["b3"],
    }


# TODO(synk): for production-sized T*B (esp. v7x's 64 MiB VMEM) stream gi over
# a T-chunk grid (BlockSpec over time, pipeline_mode=pl.Buffered(2), h carried
# in VMEM scratch across an "arbitrary" axis) and set vmem_limit_bytes
# explicitly; unnecessary at this toy size where everything fits VMEM.

if __name__ == "__main__":
    key = jax.random.PRNGKey(0)
    hidden_size = 32
    vocab_size = 50
    max_length = 8          # tokens per utterance
    batch_size = 2          # number of dialogs
    dialog_lengths_list = [3, 2]
    n_utts = sum(dialog_lengths_list)   # 5 utterances total

    k_tok, k_par = jax.random.split(key)
    # token ids, time-major (max_length, n_utts), as PyTorch's input_batch
    input_batch = jax.random.randint(k_tok, (max_length, n_utts), 0, vocab_size, jnp.int32)
    # utterance lengths sorted descending (pack_padded_sequence convention)
    utt_lengths = jnp.array([8, 7, 5, 3, 2], dtype=jnp.int32)
    # mapping of each utterance back to (dialog, position-within-dialog)
    batch_indices = jnp.array([0, 1, 0, 0, 1], dtype=jnp.int32)
    dialog_indices = jnp.array([0, 0, 1, 2, 1], dtype=jnp.int32)
    dialog_lengths = jnp.array(dialog_lengths_list, dtype=jnp.int32)

    params = init_params(k_par, hidden_size, vocab_size)
    kparams = prepare_params(params)

    preds = predictor_forward(kparams, input_batch, dialog_lengths,
                              dialog_lengths_list, utt_lengths,
                              batch_indices, dialog_indices,
                              batch_size, max_length)
    preds = jax.block_until_ready(preds)
    assert preds.shape == (batch_size,)
    assert bool(jnp.all((preds >= 0.0) & (preds <= 1.0)))
    print("KERNEL_OK")
</pallas_src>

<mosaic_0001>
module attributes {stable_mosaic.version = 11 : i64} {
  func.func @_gru_dir_kernel(%arg0: i32, %arg1: memref<1x8x8x384xf32, #tpu.memory_space<vmem>>, %arg2: memref<1x128x384xbf16, #tpu.memory_space<vmem>>, %arg3: memref<1x1x128xf32, #tpu.memory_space<vmem>>, %arg4: memref<1x8x128xf32, #tpu.memory_space<vmem>>) attributes {dimension_semantics = [#tpu.dimension_semantics<parallel>], iteration_bounds = array<i64: 2>, scalar_prefetch = 0 : i64, scratch_operands = 0 : i64, tpu.core_type = #tpu.core_type<tc>, window_params = [{transform_indices = @transform_0, window_bounds = array<i64: 1, 8, 8, 384>}, {transform_indices = @transform_1, window_bounds = array<i64: 1, 128, 384>}, {transform_indices = @transform_2, window_bounds = array<i64: 1, 1, 128>}, {transform_indices = @transform_3, window_bounds = array<i64: 1, 8, 128>}]} {
    %c0 = arith.constant 0 : index
    %c0_0 = arith.constant 0 : index
    %c0_1 = arith.constant 0 : index
    %0 = vector.load %arg2[%c0, %c0_0, %c0_1] : memref<1x128x384xbf16, #tpu.memory_space<vmem>>, vector<1x128x384xbf16>
    %1 = vector.shape_cast %0 : vector<1x128x384xbf16> to vector<128x384xbf16>
    %c0_2 = arith.constant 0 : index
    %c0_3 = arith.constant 0 : index
    %c0_4 = arith.constant 0 : index
    %2 = vector.load %arg3[%c0_2, %c0_3, %c0_4] : memref<1x1x128xf32, #tpu.memory_space<vmem>>, vector<1x1x128xf32>
    %3 = vector.shape_cast %2 : vector<1x1x128xf32> to vector<1x128xf32>
    %4 = vector.shape_cast %3 : vector<1x128xf32> to vector<1x128xf32>
    %5 = vector.broadcast %4 : vector<1x128xf32> to vector<8x128xf32>
    %cst = arith.constant 0.000000e+00 : f32
    %6 = vector.broadcast %cst : f32 to vector<8x128xf32>
    %c0_i32 = arith.constant 0 : i32
    %c0_5 = arith.constant 0 : index
    %7 = arith.index_cast %c0_i32 : i32 to index
    %c0_6 = arith.constant 0 : index
    %c0_7 = arith.constant 0 : index
    %8 = vector.load %arg1[%c0_5, %7, %c0_6, %c0_7] : memref<1x8x8x384xf32, #tpu.memory_space<vmem>>, vector<1x1x8x384xf32>
    %9 = vector.shape_cast %8 : vector<1x1x8x384xf32> to vector<8x384xf32>
    %10 = arith.truncf %6 : vector<8x128xf32> to vector<8x128xbf16>
    %cst_8 = arith.constant dense<0.000000e+00> : vector<8x384xf32>
    %11 = tpu.matmul %10, %1, %cst_8 {dimension_numbers = #tpu.dot_dimension_numbers<[1], [0], [0], [1], [0, 0, 1, 1], [], []>} : vector<8x128xbf16>, vector<128x384xbf16>, vector<8x384xf32> -> vector<8x384xf32>
    %12 = vector.extract_strided_slice %9 {offsets = [0, 0], sizes = [8, 128], strides = [1, 1]} : vector<8x384xf32> to vector<8x128xf32>
    %13 = vector.extract_strided_slice %11 {offsets = [0, 0], sizes = [8, 128], strides = [1, 1]} : vector<8x384xf32> to vector<8x128xf32>
    %14 = arith.addf %12, %13 : vector<8x128xf32>
    %15 = arith.negf %14 : vector<8x128xf32>
    %16 = math.exp %15 : vector<8x128xf32>
    %cst_9 = arith.constant 1.000000e+00 : f32
    %17 = vector.broadcast %cst_9 : f32 to vector<8x128xf32>
    %18 = arith.addf %17, %16 : vector<8x128xf32>
    %19 = arith.divf %17, %18 : vector<8x128xf32>
    %20 = vector.extract_strided_slice %9 {offsets = [0, 128], sizes = [8, 128], strides = [1, 1]} : vector<8x384xf32> to vector<8x128xf32>
    %21 = vector.extract_strided_slice %11 {offsets = [0, 128], sizes = [8, 128], strides = [1, 1]} : vector<8x384xf32> to vector<8x128xf32>
    %22 = arith.addf %20, %21 : vector<8x128xf32>
    %23 = arith.negf %22 : vector<8x128xf32>
    %24 = math.exp %23 : vector<8x128xf32>
    %cst_10 = arith.constant 1.000000e+00 : f32
    %25 = vector.broadcast %cst_10 : f32 to vector<8x128xf32>
    %26 = arith.addf %25, %24 : vector<8x128xf32>
    %27 = arith.divf %25, %26 : vector<8x128xf32>
    %28 = vector.extract_strided_slice %9 {offsets = [0, 256], sizes = [8, 128], strides = [1, 1]} : vector<8x384xf32> to vector<8x128xf32>
    %29 = vector.extract_strided_slice %11 {offsets = [0, 256], sizes = [8, 128], strides = [1, 1]} : vector<8x384xf32> to vector<8x128xf32>
    %30 = arith.addf %29, %5 : vector<8x128xf32>
    %31 = arith.mulf %19, %30 : vector<8x128xf32>
    %32 = arith.addf %28, %31 : vector<8x128xf32>
    %33 = math.tanh %32 : vector<8x128xf32>
    %cst_11 = arith.constant 1.000000e+00 : f32
    %34 = vector.broadcast %cst_11 : f32 to vector<8x128xf32>
    %35 = arith.subf %34, %27 : vector<8x128xf32>
    %36 = arith.mulf %35, %33 : vector<8x128xf32>
    %37 = arith.mulf %27, %6 : vector<8x128xf32>
    %38 = arith.addf %36, %37 : vector<8x128xf32>
    %c1_i32 = arith.constant 1 : i32
    %c0_12 = arith.constant 0 : index
    %39 = arith.index_cast %c1_i32 : i32 to index
    %c0_13 = arith.constant 0 : index
    %c0_14 = arith.constant 0 : index
    %40 = vector.load %arg1[%c0_12, %39, %c0_13, %c0_14] : memref<1x8x8x384xf32, #tpu.memory_space<vmem>>, vector<1x1x8x384xf32>
    %41 = vector.shape_cast %40 : vector<1x1x8x384xf32> to vector<8x384xf32>
    %42 = arith.truncf %38 : vector<8x128xf32> to vector<8x128xbf16>
    %cst_15 = arith.constant dense<0.000000e+00> : vector<8x384xf32>
    %43 = tpu.matmul %42, %1, %cst_15 {dimension_numbers = #tpu.dot_dimension_numbers<[1], [0], [0], [1], [0, 0, 1, 1], [], []>} : vector<8x128xbf16>, vector<128x384xbf16>, vector<8x384xf32> -> vector<8x384xf32>
    %44 = vector.extract_strided_slice %41 {offsets = [0, 0], sizes = [8, 128], strides = [1, 1]} : vector<8x384xf32> to vector<8x128xf32>
    %45 = vector.extract_strided_slice %43 {offsets = [0, 0], sizes = [8, 128], strides = [1, 1]} : vector<8x384xf32> to vector<8x128xf32>
    %46 = arith.addf %44, %45 : vector<8x128xf32>
    %47 = arith.negf %46 : vector<8x128xf32>
    %48 = math.exp %47 : vector<8x128xf32>
    %cst_16 = arith.constant 1.000000e+00 : f32
    %49 = vector.broadcast %cst_16 : f32 to vector<8x128xf32>
    %50 = arith.addf %49, %48 : vector<8x128xf32>
    %51 = arith.divf %49, %50 : vector<8x128xf32>
    %52 = vector.extract_strided_slice %41 {offsets = [0, 128], sizes = [8, 128], strides = [1, 1]} : vector<8x384xf32> to vector<8x128xf32>
    %53 = vector.extract_strided_slice %43 {offsets = [0, 128], sizes = [8, 128], strides = [1, 1]} : vector<8x384xf32> to vector<8x128xf32>
    %54 = arith.addf %52, %53 : vector<8x128xf32>
    %55 = arith.negf %54 : vector<8x128xf32>
    %56 = math.exp %55 : vector<8x128xf32>
    %cst_17 = arith.constant 1.000000e+00 : f32
    %57 = vector.broadcast %cst_17 : f32 to vector<8x128xf32>
    %58 = arith.addf %57, %56 : vector<8x128xf32>
    %59 = arith.divf %57, %58 : vector<8x128xf32>
    %60 = vector.extract_strided_slice %41 {offsets = [0, 256], sizes = [8, 128], strides = [1, 1]} : vector<8x384xf32> to vector<8x128xf32>
    %61 = vector.extract_strided_slice %43 {offsets = [0, 256], sizes = [8, 128], strides = [1, 1]} : vector<8x384xf32> to vector<8x128xf32>
    %62 = arith.addf %61, %5 : vector<8x128xf32>
    %63 = arith.mulf %51, %62 : vector<8x128xf32>
    %64 = arith.addf %60, %63 : vector<8x128xf32>
    %65 = math.tanh %64 : vector<8x128xf32>
    %cst_18 = arith.constant 1.000000e+00 : f32
    %66 = vector.broadcast %cst_18 : f32 to vector<8x128xf32>
    %67 = arith.subf %66, %59 : vector<8x128xf32>
    %68 = arith.mulf %67, %65 : vector<8x128xf32>
    %69 = arith.mulf %59, %38 : vector<8x128xf32>
    %70 = arith.addf %68, %69 : vector<8x128xf32>
    %c2_i32 = arith.constant 2 : i32
    %c0_19 = arith.constant 0 : index
    %71 = arith.index_cast %c2_i32 : i32 to index
    %c0_20 = arith.constant 0 : index
    %c0_21 = arith.constant 0 : index
    %72 = vector.load %arg1[%c0_19, %71, %c0_20, %c0_21] : memref<1x8x8x384xf32, #tpu.memory_space<vmem>>, vector<1x1x8x384xf32>
    %73 = vector.shape_cast %72 : vector<1x1x8x384xf32> to vector<8x384xf32>
    %74 = arith.truncf %70 : vector<8x128xf32> to vector<8x128xbf16>
    %cst_22 = arith.constant dense<0.000000e+00> : vector<8x384xf32>
    %75 = tpu.matmul %74, %1, %cst_22 {dimension_numbers = #tpu.dot_dimension_numbers<[1], [0], [0], [1], [0, 0, 1, 1], [], []>} : vector<8x128xbf16>, vector<128x384xbf16>, vector<8x384xf32> -> vector<8x384xf32>
    %76 = vector.extract_strided_slice %73 {offsets = [0, 0], sizes = [8, 128], strides = [1, 1]} : vector<8x384xf32> to vector<8x128xf32>
    %77 = vector.extract_strided_slice %75 {offsets = [0, 0], sizes = [8, 128], strides = [1, 1]} : vector<8x384xf32> to vector<8x128xf32>
    %78 = arith.addf %76, %77 : vector<8x128xf32>
    %79 = arith.negf %78 : vector<8x128xf32>
    %80 = math.exp %79 : vector<8x128xf32>
    %cst_23 = arith.constant 1.000000e+00 : f32
    %81 = vector.broadcast %cst_23 : f32 to vector<8x128xf32>
    %82 = arith.addf %81, %80 : vector<8x128xf32>
    %83 = arith.divf %81, %82 : vector<8x128xf32>
    %84 = vector.extract_strided_slice %73 {offsets = [0, 128], sizes = [8, 128], strides = [1, 1]} : vector<8x384xf32> to vector<8x128xf32>
    %85 = vector.extract_strided_slice %75 {offsets = [0, 128], sizes = [8, 128], strides = [1, 1]} : vector<8x384xf32> to vector<8x128xf32>
    %86 = arith.addf %84, %85 : vector<8x128xf32>
    %87 = arith.negf %86 : vector<8x128xf32>
    %88 = math.exp %87 : vector<8x128xf32>
    %cst_24 = arith.constant 1.000000e+00 : f32
    %89 = vector.broadcast %cst_24 : f32 to vector<8x128xf32>
    %90 = arith.addf %89, %88 : vector<8x128xf32>
    %91 = arith.divf %89, %90 : vector<8x128xf32>
    %92 = vector.extract_strided_slice %73 {offsets = [0, 256], sizes = [8, 128], strides = [1, 1]} : vector<8x384xf32> to vector<8x128xf32>
    %93 = vector.extract_strided_slice %75 {offsets = [0, 256], sizes = [8, 128], strides = [1, 1]} : vector<8x384xf32> to vector<8x128xf32>
    %94 = arith.addf %93, %5 : vector<8x128xf32>
    %95 = arith.mulf %83, %94 : vector<8x128xf32>
    %96 = arith.addf %92, %95 : vector<8x128xf32>
    %97 = math.tanh %96 : vector<8x128xf32>
    %cst_25 = arith.constant 1.000000e+00 : f32
    %98 = vector.broadcast %cst_25 : f32 to vector<8x128xf32>
    %99 = arith.subf %98, %91 : vector<8x128xf32>
    %100 = arith.mulf %99, %97 : vector<8x128xf32>
    %101 = arith.mulf %91, %70 : vector<8x128xf32>
    %102 = arith.addf %100, %101 : vector<8x128xf32>
    %c3_i32 = arith.constant 3 : i32
    %c0_26 = arith.constant 0 : index
    %103 = arith.index_cast %c3_i32 : i32 to index
    %c0_27 = arith.constant 0 : index
    %c0_28 = arith.constant 0 : index
    %104 = vector.load %arg1[%c0_26, %103, %c0_27, %c0_28] : memref<1x8x8x384xf32, #tpu.memory_space<vmem>>, vector<1x1x8x384xf32>
    %105 = vector.shape_cast %104 : vector<1x1x8x384xf32> to vector<8x384xf32>
    %106 = arith.truncf %102 : vector<8x128xf32> to vector<8x128xbf16>
    %cst_29 = arith.constant dense<0.000000e+00> : vector<8x384xf32>
    %107 = tpu.matmul %106, %1, %cst_29 {dimension_numbers = #tpu.dot_dimension_numbers<[1], [0], [0], [1], [0, 0, 1, 1], [], []>} : vector<8x128xbf16>, vector<128x384xbf16>, vector<8x384xf32> -> vector<8x384xf32>
    %108 = vector.extract_strided_slice %105 {offsets = [0, 0], sizes = [8, 128], strides = [1, 1]} : vector<8x384xf32> to vector<8x128xf32>
    %109 = vector.extract_strided_slice %107 {offsets = [0, 0], sizes = [8, 128], strides = [1, 1]} : vector<8x384xf32> to vector<8x128xf32>
    %110 = arith.addf %108, %109 : vector<8x128xf32>
    %111 = arith.negf %110 : vector<8x128xf32>
    %112 = math.exp %111 : vector<8x128xf32>
    %cst_30 = arith.constant 1.000000e+00 : f32
    %113 = vector.broadcast %cst_30 : f32 to vector<8x128xf32>
    %114 = arith.addf %113, %112 : vector<8x128xf32>
    %115 = arith.divf %113, %114 : vector<8x128xf32>
    %116 = vector.extract_strided_slice %105 {offsets = [0, 128], sizes = [8, 128], strides = [1, 1]} : vector<8x384xf32> to vector<8x128xf32>
    %117 = vector.extract_strided_slice %107 {offsets = [0, 128], sizes = [8, 128], strides = [1, 1]} : vector<8x384xf32> to vector<8x128xf32>
    %118 = arith.addf %116, %117 : vector<8x128xf32>
    %119 = arith.negf %118 : vector<8x128xf32>
    %120 = math.exp %119 : vector<8x128xf32>
    %cst_31 = arith.constant 1.000000e+00 : f32
    %121 = vector.broadcast %cst_31 : f32 to vector<8x128xf32>
    %122 = arith.addf %121, %120 : vector<8x128xf32>
    %123 = arith.divf %121, %122 : vector<8x128xf32>
    %124 = vector.extract_strided_slice %105 {offsets = [0, 256], sizes = [8, 128], strides = [1, 1]} : vector<8x384xf32> to vector<8x128xf32>
    %125 = vector.extract_strided_slice %107 {offsets = [0, 256], sizes = [8, 128], strides = [1, 1]} : vector<8x384xf32> to vector<8x128xf32>
    %126 = arith.addf %125, %5 : vector<8x128xf32>
    %127 = arith.mulf %115, %126 : vector<8x128xf32>
    %128 = arith.addf %124, %127 : vector<8x128xf32>
    %129 = math.tanh %128 : vector<8x128xf32>
    %cst_32 = arith.constant 1.000000e+00 : f32
    %130 = vector.broadcast %cst_32 : f32 to vector<8x128xf32>
    %131 = arith.subf %130, %123 : vector<8x128xf32>
    %132 = arith.mulf %131, %129 : vector<8x128xf32>
    %133 = arith.mulf %123, %102 : vector<8x128xf32>
    %134 = arith.addf %132, %133 : vector<8x128xf32>
    %c4_i32 = arith.constant 4 : i32
    %c0_33 = arith.constant 0 : index
    %135 = arith.index_cast %c4_i32 : i32 to index
    %c0_34 = arith.constant 0 : index
    %c0_35 = arith.constant 0 : index
    %136 = vector.load %arg1[%c0_33, %135, %c0_34, %c0_35] : memref<1x8x8x384xf32, #tpu.memory_space<vmem>>, vector<1x1x8x384xf32>
    %137 = vector.shape_cast %136 : vector<1x1x8x384xf32> to vector<8x384xf32>
    %138 = arith.truncf %134 : vector<8x128xf32> to vector<8x128xbf16>
    %cst_36 = arith.constant dense<0.000000e+00> : vector<8x384xf32>
    %139 = tpu.matmul %138, %1, %cst_36 {dimension_numbers = #tpu.dot_dimension_numbers<[1], [0], [0], [1], [0, 0, 1, 1], [], []>} : vector<8x128xbf16>, vector<128x384xbf16>, vector<8x384xf32> -> vector<8x384xf32>
    %140 = vector.extract_strided_slice %137 {offsets = [0, 0], sizes = [8, 128], strides = [1, 1]} : vector<8x384xf32> to vector<8x128xf32>
    %141 = vector.extract_strided_slice %139 {offsets = [0, 0], sizes = [8, 128], strides = [1, 1]} : vector<8x384xf32> to vector<8x128xf32>
    %142 = arith.addf %140, %141 : vector<8x128xf32>
    %143 = arith.negf %142 : vector<8x128xf32>
    %144 = math.exp %143 : vector<8x128xf32>
    %cst_37 = arith.constant 1.000000e+00 : f32
    %145 = vector.broadcast %cst_37 : f32 to vector<8x128xf32>
    %146 = arith.addf %145, %144 : vector<8x128xf32>
    %147 = arith.divf %145, %146 : vector<8x128xf32>
    %148 = vector.extract_strided_slice %137 {offsets = [0, 128], sizes = [8, 128], strides = [1, 1]} : vector<8x384xf32> to vector<8x128xf32>
    %149 = vector.extract_strided_slice %139 {offsets = [0, 128], sizes = [8, 128], strides = [1, 1]} : vector<8x384xf32> to vector<8x128xf32>
    %150 = arith.addf %148, %149 : vector<8x128xf32>
    %151 = arith.negf %150 : vector<8x128xf32>
    %152 = math.exp %151 : vector<8x128xf32>
    %cst_38 = arith.constant 1.000000e+00 : f32
    %153 = vector.broadcast %cst_38 : f32 to vector<8x128xf32>
    %154 = arith.addf %153, %152 : vector<8x128xf32>
    %155 = arith.divf %153, %154 : vector<8x128xf32>
    %156 = vector.extract_strided_slice %137 {offsets = [0, 256], sizes = [8, 128], strides = [1, 1]} : vector<8x384xf32> to vector<8x128xf32>
    %157 = vector.extract_strided_slice %139 {offsets = [0, 256], sizes = [8, 128], strides = [1, 1]} : vector<8x384xf32> to vector<8x128xf32>
    %158 = arith.addf %157, %5 : vector<8x128xf32>
    %159 = arith.mulf %147, %158 : vector<8x128xf32>
    %160 = arith.addf %156, %159 : vector<8x128xf32>
    %161 = math.tanh %160 : vector<8x128xf32>
    %cst_39 = arith.constant 1.000000e+00 : f32
    %162 = vector.broadcast %cst_39 : f32 to vector<8x128xf32>
    %163 = arith.subf %162, %155 : vector<8x128xf32>
    %164 = arith.mulf %163, %161 : vector<8x128xf32>
    %165 = arith.mulf %155, %134 : vector<8x128xf32>
    %166 = arith.addf %164, %165 : vector<8x128xf32>
    %c5_i32 = arith.constant 5 : i32
    %c0_40 = arith.constant 0 : index
    %167 = arith.index_cast %c5_i32 : i32 to index
    %c0_41 = arith.constant 0 : index
    %c0_42 = arith.constant 0 : index
    %168 = vector.load %arg1[%c0_40, %167, %c0_41, %c0_42] : memref<1x8x8x384xf32, #tpu.memory_space<vmem>>, vector<1x1x8x384xf32>
    %169 = vector.shape_cast %168 : vector<1x1x8x384xf32> to vector<8x384xf32>
    %170 = arith.truncf %166 : vector<8x128xf32> to vector<8x128xbf16>
    %cst_43 = arith.constant dense<0.000000e+00> : vector<8x384xf32>
    %171 = tpu.matmul %170, %1, %cst_43 {dimension_numbers = #tpu.dot_dimension_numbers<[1], [0], [0], [1], [0, 0, 1, 1], [], []>} : vector<8x128xbf16>, vector<128x384xbf16>, vector<8x384xf32> -> vector<8x384xf32>
    %172 = vector.extract_strided_slice %169 {offsets = [0, 0], sizes = [8, 128], strides = [1, 1]} : vector<8x384xf32> to vector<8x128xf32>
    %173 = vector.extract_strided_slice %171 {offsets = [0, 0], sizes = [8, 128], strides = [1, 1]} : vector<8x384xf32> to vector<8x128xf32>
    %174 = arith.addf %172, %173 : vector<8x128xf32>
    %175 = arith.negf %174 : vector<8x128xf32>
    %176 = math.exp %175 : vector<8x128xf32>
    %cst_44 = arith.constant 1.000000e+00 : f32
    %177 = vector.broadcast %cst_44 : f32 to vector<8x128xf32>
    %178 = arith.addf %177, %176 : vector<8x128xf32>
    %179 = arith.divf %177, %178 : vector<8x128xf32>
    %180 = vector.extract_strided_slice %169 {offsets = [0, 128], sizes = [8, 128], strides = [1, 1]} : vector<8x384xf32> to vector<8x128xf32>
    %181 = vector.extract_strided_slice %171 {offsets = [0, 128], sizes = [8, 128], strides = [1, 1]} : vector<8x384xf32> to vector<8x128xf32>
    %182 = arith.addf %180, %181 : vector<8x128xf32>
    %183 = arith.negf %182 : vector<8x128xf32>
    %184 = math.exp %183 : vector<8x128xf32>
    %cst_45 = arith.constant 1.000000e+00 : f32
    %185 = vector.broadcast %cst_45 : f32 to vector<8x128xf32>
    %186 = arith.addf %185, %184 : vector<8x128xf32>
    %187 = arith.divf %185, %186 : vector<8x128xf32>
    %188 = vector.extract_strided_slice %169 {offsets = [0, 256], sizes = [8, 128], strides = [1, 1]} : vector<8x384xf32> to vector<8x128xf32>
    %189 = vector.extract_strided_slice %171 {offsets = [0, 256], sizes = [8, 128], strides = [1, 1]} : vector<8x384xf32> to vector<8x128xf32>
    %190 = arith.addf %189, %5 : vector<8x128xf32>
    %191 = arith.mulf %179, %190 : vector<8x128xf32>
    %192 = arith.addf %188, %191 : vector<8x128xf32>
    %193 = math.tanh %192 : vector<8x128xf32>
    %cst_46 = arith.constant 1.000000e+00 : f32
    %194 = vector.broadcast %cst_46 : f32 to vector<8x128xf32>
    %195 = arith.subf %194, %187 : vector<8x128xf32>
    %196 = arith.mulf %195, %193 : vector<8x128xf32>
    %197 = arith.mulf %187, %166 : vector<8x128xf32>
    %198 = arith.addf %196, %197 : vector<8x128xf32>
    %c6_i32 = arith.constant 6 : i32
    %c0_47 = arith.constant 0 : index
    %199 = arith.index_cast %c6_i32 : i32 to index
    %c0_48 = arith.constant 0 : index
    %c0_49 = arith.constant 0 : index
    %200 = vector.load %arg1[%c0_47, %199, %c0_48, %c0_49] : memref<1x8x8x384xf32, #tpu.memory_space<vmem>>, vector<1x1x8x384xf32>
    %201 = vector.shape_cast %200 : vector<1x1x8x384xf32> to vector<8x384xf32>
    %202 = arith.truncf %198 : vector<8x128xf32> to vector<8x128xbf16>
    %cst_50 = arith.constant dense<0.000000e+00> : vector<8x384xf32>
    %203 = tpu.matmul %202, %1, %cst_50 {dimension_numbers = #tpu.dot_dimension_numbers<[1], [0], [0], [1], [0, 0, 1, 1], [], []>} : vector<8x128xbf16>, vector<128x384xbf16>, vector<8x384xf32> -> vector<8x384xf32>
    %204 = vector.extract_strided_slice %201 {offsets = [0, 0], sizes = [8, 128], strides = [1, 1]} : vector<8x384xf32> to vector<8x128xf32>
    %205 = vector.extract_strided_slice %203 {offsets = [0, 0], sizes = [8, 128], strides = [1, 1]} : vector<8x384xf32> to vector<8x128xf32>
    %206 = arith.addf %204, %205 : vector<8x128xf32>
    %207 = arith.negf %206 : vector<8x128xf32>
    %208 = math.exp %207 : vector<8x128xf32>
    %cst_51 = arith.constant 1.000000e+00 : f32
    %209 = vector.broadcast %cst_51 : f32 to vector<8x128xf32>
    %210 = arith.addf %209, %208 : vector<8x128xf32>
    %211 = arith.divf %209, %210 : vector<8x128xf32>
    %212 = vector.extract_strided_slice %201 {offsets = [0, 128], sizes = [8, 128], strides = [1, 1]} : vector<8x384xf32> to vector<8x128xf32>
    %213 = vector.extract_strided_slice %203 {offsets = [0, 128], sizes = [8, 128], strides = [1, 1]} : vector<8x384xf32> to vector<8x128xf32>
    %214 = arith.addf %212, %213 : vector<8x128xf32>
    %215 = arith.negf %214 : vector<8x128xf32>
    %216 = math.exp %215 : vector<8x128xf32>
    %cst_52 = arith.constant 1.000000e+00 : f32
    %217 = vector.broadcast %cst_52 : f32 to vector<8x128xf32>
    %218 = arith.addf %217, %216 : vector<8x128xf32>
    %219 = arith.divf %217, %218 : vector<8x128xf32>
    %220 = vector.extract_strided_slice %201 {offsets = [0, 256], sizes = [8, 128], strides = [1, 1]} : vector<8x384xf32> to vector<8x128xf32>
    %221 = vector.extract_strided_slice %203 {offsets = [0, 256], sizes = [8, 128], strides = [1, 1]} : vector<8x384xf32> to vector<8x128xf32>
    %222 = arith.addf %221, %5 : vector<8x128xf32>
    %223 = arith.mulf %211, %222 : vector<8x128xf32>
    %224 = arith.addf %220, %223 : vector<8x128xf32>
    %225 = math.tanh %224 : vector<8x128xf32>
    %cst_53 = arith.constant 1.000000e+00 : f32
    %226 = vector.broadcast %cst_53 : f32 to vector<8x128xf32>
    %227 = arith.subf %226, %219 : vector<8x128xf32>
    %228 = arith.mulf %227, %225 : vector<8x128xf32>
    %229 = arith.mulf %219, %198 : vector<8x128xf32>
    %230 = arith.addf %228, %229 : vector<8x128xf32>
    %c7_i32 = arith.constant 7 : i32
    %c0_54 = arith.constant 0 : index
    %231 = arith.index_cast %c7_i32 : i32 to index
    %c0_55 = arith.constant 0 : index
    %c0_56 = arith.constant 0 : index
    %232 = vector.load %arg1[%c0_54, %231, %c0_55, %c0_56] : memref<1x8x8x384xf32, #tpu.memory_space<vmem>>, vector<1x1x8x384xf32>
    %233 = vector.shape_cast %232 : vector<1x1x8x384xf32> to vector<8x384xf32>
    %234 = arith.truncf %230 : vector<8x128xf32> to vector<8x128xbf16>
    %cst_57 = arith.constant dense<0.000000e+00> : vector<8x384xf32>
    %235 = tpu.matmul %234, %1, %cst_57 {dimension_numbers = #tpu.dot_dimension_numbers<[1], [0], [0], [1], [0, 0, 1, 1], [], []>} : vector<8x128xbf16>, vector<128x384xbf16>, vector<8x384xf32> -> vector<8x384xf32>
    %236 = vector.extract_strided_slice %233 {offsets = [0, 0], sizes = [8, 128], strides = [1, 1]} : vector<8x384xf32> to vector<8x128xf32>
    %237 = vector.extract_strided_slice %235 {offsets = [0, 0], sizes = [8, 128], strides = [1, 1]} : vector<8x384xf32> to vector<8x128xf32>
    %238 = arith.addf %236, %237 : vector<8x128xf32>
    %239 = arith.negf %238 : vector<8x128xf32>
    %240 = math.exp %239 : vector<8x128xf32>
    %cst_58 = arith.constant 1.000000e+00 : f32
    %241 = vector.broadcast %cst_58 : f32 to vector<8x128xf32>
    %242 = arith.addf %241, %240 : vector<8x128xf32>
    %243 = arith.divf %241, %242 : vector<8x128xf32>
    %244 = vector.extract_strided_slice %233 {offsets = [0, 128], sizes = [8, 128], strides = [1, 1]} : vector<8x384xf32> to vector<8x128xf32>
    %245 = vector.extract_strided_slice %235 {offsets = [0, 128], sizes = [8, 128], strides = [1, 1]} : vector<8x384xf32> to vector<8x128xf32>
    %246 = arith.addf %244, %245 : vector<8x128xf32>
    %247 = arith.negf %246 : vector<8x128xf32>
    %248 = math.exp %247 : vector<8x128xf32>
    %cst_59 = arith.constant 1.000000e+00 : f32
    %249 = vector.broadcast %cst_59 : f32 to vector<8x128xf32>
    %250 = arith.addf %249, %248 : vector<8x128xf32>
    %251 = arith.divf %249, %250 : vector<8x128xf32>
    %252 = vector.extract_strided_slice %233 {offsets = [0, 256], sizes = [8, 128], strides = [1, 1]} : vector<8x384xf32> to vector<8x128xf32>
    %253 = vector.extract_strided_slice %235 {offsets = [0, 256], sizes = [8, 128], strides = [1, 1]} : vector<8x384xf32> to vector<8x128xf32>
    %254 = arith.addf %253, %5 : vector<8x128xf32>
    %255 = arith.mulf %243, %254 : vector<8x128xf32>
    %256 = arith.addf %252, %255 : vector<8x128xf32>
    %257 = math.tanh %256 : vector<8x128xf32>
    %cst_60 = arith.constant 1.000000e+00 : f32
    %258 = vector.broadcast %cst_60 : f32 to vector<8x128xf32>
    %259 = arith.subf %258, %251 : vector<8x128xf32>
    %260 = arith.mulf %259, %257 : vector<8x128xf32>
    %261 = arith.mulf %251, %230 : vector<8x128xf32>
    %262 = arith.addf %260, %261 : vector<8x128xf32>
    %c8_i32 = arith.constant 8 : i32
    %c0_61 = arith.constant 0 : index
    %c0_62 = arith.constant 0 : index
    %c0_63 = arith.constant 0 : index
    %263 = vector.load %arg4[%c0_61, %c0_62, %c0_63] : memref<1x8x128xf32, #tpu.memory_space<vmem>>, vector<1x8x128xf32>
    %264 = vector.shape_cast %263 : vector<1x8x128xf32> to vector<8x128xf32>
    %265 = vector.shape_cast %262 : vector<8x128xf32> to vector<1x8x128xf32>
    tpu.vector_store %arg4[%c0_61, %c0_62, %c0_63], %265 {strides = array<i32>} : memref<1x8x128xf32, #tpu.memory_space<vmem>>, vector<1x8x128xf32>,
    return
  }
  func.func @transform_0(%arg0: i32) -> (i32, i32, i32, i32) {
    %c0_i32 = arith.constant 0 : i32
    %c0_i32_0 = arith.constant 0 : i32
    %c0_i32_1 = arith.constant 0 : i32
    %c0_i32_2 = arith.constant 0 : i32
    return %arg0, %c0_i32, %c0_i32_0, %c0_i32_1 : i32, i32, i32, i32
  }
  func.func @transform_1(%arg0: i32) -> (i32, i32, i32) {
    %c0_i32 = arith.constant 0 : i32
    %c0_i32_0 = arith.constant 0 : i32
    %c0_i32_1 = arith.constant 0 : i32
    return %arg0, %c0_i32, %c0_i32_0 : i32, i32, i32
  }
  func.func @transform_2(%arg0: i32) -> (i32, i32, i32) {
    %c0_i32 = arith.constant 0 : i32
    %c0_i32_0 = arith.constant 0 : i32
    %c0_i32_1 = arith.constant 0 : i32
    return %arg0, %c0_i32, %c0_i32_0 : i32, i32, i32
  }
  func.func @transform_3(%arg0: i32) -> (i32, i32, i32) {
    %c0_i32 = arith.constant 0 : i32
    %c0_i32_0 = arith.constant 0 : i32
    %c0_i32_1 = arith.constant 0 : i32
    return %arg0, %c0_i32, %c0_i32_0 : i32, i32, i32
  }
}

</mosaic_0001>

<llo_original>
// kernel: tpu_custom_call.1
$region0: #{tpu_custom_call.1}
  #allocation0 [shape = 'u32[]', space=smem, size = 0x4, offset = 0x4, fixed_abs, tag = 'smem constant byte address 0x4 - core index']
  #allocation1 [shape = 'u32[72,128]{1,0:T(1,128)}', space=vmem, size = 0x9000, scoped, tag = 'internal scratch']
  %s0 = inlined_call_operand.hbm [shape: f32[2,8,8,384], index: 0, kind: input, shape index: {}]
  %s1 = inlined_call_operand.hbm [shape: bf16[2,128,384], index: 1, kind: input, shape index: {}]
  %s2 = inlined_call_operand.hbm [shape: f32[2,1,128], index: 2, kind: input, shape index: {}]
  %s3 = inlined_call_operand.hbm [shape: f32[2,8,128], index: 3, kind: output, shape index: {}]
  %s4 = sld [smem:[#allocation0]]
  $region57: #{tpu_custom_call.1} parent=0
    _
  %s6 = ssub.s32 1, %s4
  %s7 = scalar_select 0, %s6, %s4
  $region1: #{tpu_custom_call.1} parent=0
    #allocation2 [shape = 'u8[196608]{0}', space=vmem, size = 0x30000, scoped, tag = 'input window, operand 0']
    #allocation3 [shape = 's32[2]{0}', space=sflag, size = 0x8, scoped, tag = 'scoped memory for tpu_custom_call.1']
    #allocation4 [shape = 's32[2]{0}', space=sflag, size = 0x8, scoped, tag = 'scoped memory for tpu_custom_call.1']
    #allocation5 [shape = 'u8[196608]{0}', space=vmem, size = 0x30000, scoped, tag = 'input window, operand 1']
    #allocation6 [shape = 's32[2]{0}', space=sflag, size = 0x8, scoped, tag = 'scoped memory for tpu_custom_call.1']
    #allocation7 [shape = 'u8[1024]{0}', space=vmem, size = 0x400, scoped, tag = 'input window, operand 2']
    #allocation8 [shape = 'u8[8192]{0}', space=vmem, size = 0x2000, scoped, tag = 'output window, operand 0']
    %8 = vsyncpa [#allocation3], 0
    %s9 = scalar_lea.sflag [#allocation3], 1
    %10 = vsyncpa %s9, 0
    %11 = vsyncpa [#allocation6], 0
    %s12 = scalar_lea.sflag [#allocation6], 1
    %13 = vsyncpa %s12, 0
    %14 = vsyncpa [#allocation4], 0
    %s15 = scalar_lea.sflag [#allocation4], 1
    %16 = vsyncpa %s15, 0
    loop: start=0, step=1, limit=4
    $region2: #{tpu_custom_call.1} parent=1 // loop_pre_header
      _
    $region3: #{tpu_custom_call.1} parent=1 // loop_header
      %s18 = sphi 0, %s22
      %p19 = scmp.ge.s32.totalorder %s18, 4
      %s28 = sphi 0, %s30
      %s31 = sphi 0, %s28
      %s32 = sphi 0, %s31
      %s48 = sphi 0, %s32
      %s54 = sphi 0, %s56
      %s57 = sphi 0, %s54
      %s58 = sphi 0, %s57
      %s74 = sphi 0, %s58
      %s80 = sphi 0, %s82
      %s83 = sphi 0, %s80
      %s84 = sphi 0, %s83
      %s100 = sphi 0, %s84
      %s106 = sphi 0, %s108
      %s109 = sphi 0, %s106
      %s110 = sphi 0, %s109
      %s126 = sphi 0, %s110
    $region4: #{tpu_custom_call.1} parent=1 // loop_header_branch
      %21 = sbr.rel (%p19) target = $region8
    $region5: #{tpu_custom_call.1} parent=1 // loop_body
      %s23 = ssub.s32 %s18, 1
      %s24 = ssub.s32 %s18, 2
      %s25 = sadd.s32 %s18, 1
      %s26 = ssub.s32 %s18, %s25
      %p27 = scmp.eq.s32.totalorder %s26, 0
      %s29 = sadd.s32 %s28, 1
      %s30 = scalar_select %p27, %s28, %s29
      %p33 = pneg %p27
      %p34 = scmp.eq.s32.totalorder %s18, 1
      %p35 = por %p33, %p34
      %p36 = scmp.ne.s32.totalorder %s28, %s31
      %p37 = scmp.eq.s32.totalorder %s18, 0
      %p38 = por %p36, %p37
      %p39 = scmp.ne.s32.totalorder %s28, %s31
      %p40 = scmp.eq.s32.totalorder %s23, 1
      %p41 = por %p39, %p40
      %p42 = scmp.ne.s32.totalorder %s31, %s32
      %p43 = scmp.eq.s32.totalorder %s23, 0
      %p44 = por %p42, %p43
      %p45 = scmp.ne.s32.totalorder %s31, %s32
      %p46 = scmp.eq.s32.totalorder %s24, 1
      %p47 = por %p45, %p46
      %p49 = scmp.ne.s32.totalorder %s32, %s48
      %p50 = scmp.eq.s32.totalorder %s24, 0
      %p51 = por %p49, %p50
      %s52 = ssub.s32 %s18, %s25
      %p53 = scmp.eq.s32.totalorder %s52, 0
      %s55 = sadd.s32 %s54, 1
      %s56 = scalar_select %p53, %s54, %s55
      %p59 = pneg %p53
      %p60 = scmp.eq.s32.totalorder %s18, 1
      %p61 = por %p59, %p60
      %p62 = scmp.ne.s32.totalorder %s54, %s57
      %p63 = scmp.eq.s32.totalorder %s18, 0
      %p64 = por %p62, %p63
      %p65 = scmp.ne.s32.totalorder %s54, %s57
      %p66 = scmp.eq.s32.totalorder %s23, 1
      %p67 = por %p65, %p66
      %p68 = scmp.ne.s32.totalorder %s57, %s58
      %p69 = scmp.eq.s32.totalorder %s23, 0
      %p70 = por %p68, %p69
      %p71 = scmp.ne.s32.totalorder %s57, %s58
      %p72 = scmp.eq.s32.totalorder %s24, 1
      %p73 = por %p71, %p72
      %p75 = scmp.ne.s32.totalorder %s58, %s74
      %p76 = scmp.eq.s32.totalorder %s24, 0
      %p77 = por %p75, %p76
      %s78 = ssub.s32 %s18, %s25
      %p79 = scmp.eq.s32.totalorder %s78, 0
      %s81 = sadd.s32 %s80, 1
      %s82 = scalar_select %p79, %s80, %s81
      %p85 = pneg %p79
      %p86 = scmp.eq.s32.totalorder %s18, 1
      %p87 = por %p85, %p86
      %p88 = scmp.ne.s32.totalorder %s80, %s83
      %p89 = scmp.eq.s32.totalorder %s18, 0
      %p90 = por %p88, %p89
      %p91 = scmp.ne.s32.totalorder %s80, %s83
      %p92 = scmp.eq.s32.totalorder %s23, 1
      %p93 = por %p91, %p92
      %p94 = scmp.ne.s32.totalorder %s83, %s84
      %p95 = scmp.eq.s32.totalorder %s23, 0
      %p96 = por %p94, %p95
      %p97 = scmp.ne.s32.totalorder %s83, %s84
      %p98 = scmp.eq.s32.totalorder %s24, 1
      %p99 = por %p97, %p98
      %p101 = scmp.ne.s32.totalorder %s84, %s100
      %p102 = scmp.eq.s32.totalorder %s24, 0
      %p103 = por %p101, %p102
      %s104 = ssub.s32 %s18, %s25
      %p105 = scmp.eq.s32.totalorder %s104, 0
      %s107 = sadd.s32 %s106, 1
      %s108 = scalar_select %p105, %s106, %s107
      %p111 = pneg %p105
      %p112 = scmp.eq.s32.totalorder %s18, 1
      %p113 = por %p111, %p112
      %p114 = scmp.ne.s32.totalorder %s106, %s109
      %p115 = scmp.eq.s32.totalorder %s18, 0
      %p116 = por %p114, %p115
      %p117 = scmp.ne.s32.totalorder %s106, %s109
      %p118 = scmp.eq.s32.totalorder %s23, 1
      %p119 = por %p117, %p118
      %p120 = scmp.ne.s32.totalorder %s109, %s110
      %p121 = scmp.eq.s32.totalorder %s23, 0
      %p122 = por %p120, %p121
      %p123 = scmp.ne.s32.totalorder %s109, %s110
      %p124 = scmp.eq.s32.totalorder %s24, 1
      %p125 = por %p123, %p124
      %p127 = scmp.ne.s32.totalorder %s110, %s126
      %p128 = scmp.eq.s32.totalorder %s24, 0
      %p129 = por %p127, %p128
      %p130 = scmp.le.s32.totalorder 1, %s18
      %p131 = scmp.lt.s32.totalorder %s18, 3
      %p132 = pnand %p130, %p131
      %p133 = pneg %p132
      // Predicated region
      $region9: #{tpu_custom_call.1} parent=5 // pred_check
        _
      $region10: #{tpu_custom_call.1} parent=5 // pred_check_branch
        %135 = sbr.rel (%p132) target = $region12
      $region11: #{tpu_custom_call.1} parent=5 // pred_region
        %s136 = ssub.s32 %s18, 1
      $region12: #{tpu_custom_call.1} parent=5 // pred_fallthru
        _
      %p137 = scmp.lt.s32.totalorder %s18, 2
      // Predicated region
      $region13: #{tpu_custom_call.1} parent=5 // pred_check
        %p138 = pneg %p137
      $region14: #{tpu_custom_call.1} parent=5 // pred_check_branch
        %140 = sbr.rel (%p138) target = $region16
      $region15: #{tpu_custom_call.1} parent=5 // pred_region
        // Predicated region
        $region17: #{tpu_custom_call.1} parent=15 // pred_check
          %p141 = pneg %p38
        $region18: #{tpu_custom_call.1} parent=15 // pred_check_branch
          %143 = sbr.rel (%p141) target = $region20
        $region19: #{tpu_custom_call.1} parent=15 // pred_region
          %s144 = sand.u32 %s28, 1
          %s145 = scalar_lea.sflag [#allocation3], %s144
          %s146 = sand.u32 %s28, 1
          %s147 = smul.addr %s146, 192
          %s148 = scalar_lea.vmem [#allocation2], %s147
          %150 = vsyncadd %s145, 0
          %s151 = smul.addr %s18, 24
          %s152 = smul.addr %s151, 8
          %s153 = scalar_lea.hbm %s0, %s152
          %s154 = sshll.u32 %s153, 4
          %s155 = int_to_ptr.hbm [resolvable:$true] %s154
          %s156 = sshll.u32 %s148, 4
          %s157 = int_to_ptr.vmem [resolvable:$true] %s156
          %162 = dma.hbm_to_vmem [thread:$0]  %s155, 3072, %s157, %s145, 384, 384, 24
        $region20: #{tpu_custom_call.1} parent=15 // pred_fallthru
          _
        // Predicated region
        $region21: #{tpu_custom_call.1} parent=15 // pred_check
          %p163 = pneg %p64
        $region22: #{tpu_custom_call.1} parent=15 // pred_check_branch
          %165 = sbr.rel (%p163) target = $region24
        $region23: #{tpu_custom_call.1} parent=15 // pred_region
          %s166 = sand.u32 %s18, 1
          %s167 = scalar_lea.sflag [#allocation6], %s166
          %s168 = sand.u32 %s54, 1
          %s169 = smul.addr %s168, 192
          %s170 = scalar_lea.vmem [#allocation5], %s169
          %172 = vsyncadd %s167, 0
          %s173 = smul.addr %s18, 48
          %s174 = smul.addr %s173, 4
          %s175 = scalar_lea.hbm %s1, %s174
          %s176 = sshll.u32 %s175, 4
          %s177 = int_to_ptr.hbm [resolvable:$true] %s176
          %s178 = sshll.u32 %s170, 4
          %s179 = int_to_ptr.vmem [resolvable:$true] %s178
          %184 = dma.hbm_to_vmem [thread:$0]  %s177, 3072, %s179, %s167, 192, 192, 12
        $region24: #{tpu_custom_call.1} parent=15 // pred_fallthru
          _
        // Predicated region
        $region25: #{tpu_custom_call.1} parent=15 // pred_check
          %p185 = pneg %p90
        $region26: #{tpu_custom_call.1} parent=15 // pred_check_branch
          %187 = sbr.rel (%p185) target = $region28
        $region27: #{tpu_custom_call.1} parent=15 // pred_region
          %s188 = sand.u32 %s18, 1
          %s189 = scalar_lea.sflag [#allocation6], %s188
          %s190 = sand.u32 %s80, 1
          %s191 = scalar_lea.vmem [#allocation7], %s190
          %193 = vsyncadd %s189, 0
          %s194 = scalar_lea.hbm %s2, %s18
          %s196 = sshll.u32 %s194, 4
          %s197 = int_to_ptr.hbm [resolvable:$true] %s196
          %s198 = sshll.u32 %s191, 4
          %s199 = int_to_ptr.vmem [resolvable:$true] %s198
          %201 = dma.hbm_to_vmem [thread:$0]  %s197, 16, %s199, %s189
        $region28: #{tpu_custom_call.1} parent=15 // pred_fallthru
          _
      $region16: #{tpu_custom_call.1} parent=5 // pred_fallthru
        _
      %p202 = scmp.le.s32.totalorder 1, %s18
      %p203 = scmp.lt.s32.totalorder %s18, 3
      %p204 = pnand %p202, %p203
      %p205 = pneg %p204
      // Predicated region
      $region29: #{tpu_custom_call.1} parent=5 // pred_check
        _
      $region30: #{tpu_custom_call.1} parent=5 // pred_check_branch
        %207 = sbr.rel (%p204) target = $region32
      $region31: #{tpu_custom_call.1} parent=5 // pred_region
        %s208 = ssub.s32 %s18, 1
        %s209 = sand.u32 %s31, 1
        %s210 = scalar_lea.sflag [#allocation3], %s209
        %s211 = sand.u32 %s31, 1
        %s212 = smul.addr %s211, 192
        %s213 = scalar_lea.vmem [#allocation2], %s212
        // Predicated region
        $region33: #{tpu_custom_call.1} parent=31 // pred_check
          %p214 = pneg %p44
        $region34: #{tpu_custom_call.1} parent=31 // pred_check_branch
          %216 = sbr.rel (%p214) target = $region36
        $region35: #{tpu_custom_call.1} parent=31 // pred_region
          %218 = dma.done %s210, 3072
        $region36: #{tpu_custom_call.1} parent=31 // pred_fallthru
          _
        %s219 = sand.u32 %s23, 1
        %s220 = scalar_lea.sflag [#allocation6], %s219
        %s221 = sand.u32 %s57, 1
        %s222 = smul.addr %s221, 192
        %s223 = scalar_lea.vmem [#allocation5], %s222
        // Predicated region
        $region37: #{tpu_custom_call.1} parent=31 // pred_check
          %p224 = pneg %p70
        $region38: #{tpu_custom_call.1} parent=31 // pred_check_branch
          %226 = sbr.rel (%p224) target = $region40
        $region39: #{tpu_custom_call.1} parent=31 // pred_region
          %228 = dma.done %s220, 3072
        $region40: #{tpu_custom_call.1} parent=31 // pred_fallthru
          _
        %s229 = sand.u32 %s23, 1
        %s230 = scalar_lea.sflag [#allocation6], %s229
        %s231 = sand.u32 %s83, 1
        %s232 = scalar_lea.vmem [#allocation7], %s231
        // Predicated region
        $region41: #{tpu_custom_call.1} parent=31 // pred_check
          %p233 = pneg %p96
        $region42: #{tpu_custom_call.1} parent=31 // pred_check_branch
          %235 = sbr.rel (%p233) target = $region44
        $region43: #{tpu_custom_call.1} parent=31 // pred_region
          %237 = dma.done %s230, 16
        $region44: #{tpu_custom_call.1} parent=31 // pred_fallthru
          _
        %s238 = sand.u32 %s31, 1
        %s239 = scalar_lea.sflag [#allocation3], %s238
        %s240 = sand.u32 %s31, 1
        %s241 = smul.addr %s240, 192
        %s242 = scalar_lea.vmem [#allocation2], %s241
        %p243 = pneg %p44
        %p244 = pneg %p41
        %s245 = sand.u32 %s23, 1
        %s246 = scalar_lea.sflag [#allocation6], %s245
        %s247 = sand.u32 %s57, 1
        %s248 = smul.addr %s247, 192
        %s249 = scalar_lea.vmem [#allocation5], %s248
        %p250 = pneg %p70
        %p251 = pneg %p67
        %s252 = sand.u32 %s23, 1
        %s253 = scalar_lea.sflag [#allocation6], %s252
        %s254 = sand.u32 %s83, 1
        %s255 = scalar_lea.vmem [#allocation7], %s254
        %p256 = pneg %p96
        %p257 = pneg %p93
        %p258 = pneg %p122
        %p259 = pneg %p119
        %s260 = sand.u32 %s109, 1
        %s261 = scalar_lea.sflag [#allocation4], %s260
        %s262 = sand.u32 %s109, 1
        %s263 = smul.addr %s262, 8
        %s264 = scalar_lea.vmem [#allocation8], %s263
        %v266 = vld [vmem:[%s223] sm:$0xff]
        %v267 = vld [vmem:[%s223 + $0x8] sm:$0xf]
        %v268 = vld [vmem:[%s223 + $0xc] sm:$0xff]
        %v269 = vld [vmem:[%s223 + $0x14] sm:$0xf]
        %v270 = vld [vmem:[%s223 + $0x18] sm:$0xff]
        %v271 = vld [vmem:[%s223 + $0x20] sm:$0xf]
        %v272 = vld [vmem:[%s223 + $0x24] sm:$0xff]
        %v273 = vld [vmem:[%s223 + $0x2c] sm:$0xf]
        %v274 = vld [vmem:[%s223 + $0x30] sm:$0xff]
        %v275 = vld [vmem:[%s223 + $0x38] sm:$0xf]
        %v276 = vld [vmem:[%s223 + $0x3c] sm:$0xff]
        %v277 = vld [vmem:[%s223 + $0x44] sm:$0xf]
        %v278 = vld [vmem:[%s223 + $0x48] sm:$0xff]
        %v279 = vld [vmem:[%s223 + $0x50] sm:$0xf]
        %v280 = vld [vmem:[%s223 + $0x54] sm:$0xff]
        %v281 = vld [vmem:[%s223 + $0x5c] sm:$0xf]
        %v282 = vld [vmem:[%s223 + $0x60] sm:$0xff]
        %v283 = vld [vmem:[%s223 + $0x68] sm:$0xf]
        %v284 = vld [vmem:[%s223 + $0x6c] sm:$0xff]
        %v285 = vld [vmem:[%s223 + $0x74] sm:$0xf]
        %v286 = vld [vmem:[%s223 + $0x78] sm:$0xff]
        %v287 = vld [vmem:[%s223 + $0x80] sm:$0xf]
        %v288 = vld [vmem:[%s223 + $0x84] sm:$0xff]
        %v289 = vld [vmem:[%s223 + $0x8c] sm:$0xf]
        %v290 = vld [vmem:[%s223 + $0x90] sm:$0xff]
        %v291 = vld [vmem:[%s223 + $0x98] sm:$0xf]
        %v292 = vld [vmem:[%s223 + $0x9c] sm:$0xff]
        %v293 = vld [vmem:[%s223 + $0xa4] sm:$0xf]
        %v294 = vld [vmem:[%s223 + $0xa8] sm:$0xff]
        %v295 = vld [vmem:[%s223 + $0xb0] sm:$0xf]
        %v296 = vld [vmem:[%s223 + $0xb4] sm:$0xff]
        %v297 = vld [vmem:[%s223 + $0xbc] sm:$0xf]
        %v298 = vld [vmem:[%s232] sm:$0x1]
        %v300 = vperm.slane %v298, 0
        %v302 = vld [vmem:[%s213] sm:$0xff]
        %v303 = vld [vmem:[%s213 + $0x8] sm:$0xff]
        %v304 = vld [vmem:[%s213 + $0x10] sm:$0xff]
        %v337 = vunpack.c.l.b16 %v266
        %v338 = vunpack.c.h.b16 %v266
        %v339 = vunpack.c.l.b16 %v267
        %v340 = vunpack.c.l.b16 %v268
        %v341 = vunpack.c.h.b16 %v268
        %v342 = vunpack.c.l.b16 %v269
        %v343 = vunpack.c.l.b16 %v270
        %v344 = vunpack.c.h.b16 %v270
        %v345 = vunpack.c.l.b16 %v271
        %v346 = vunpack.c.l.b16 %v272
        %v347 = vunpack.c.h.b16 %v272
        %v348 = vunpack.c.l.b16 %v273
        %v349 = vunpack.c.l.b16 %v274
        %v350 = vunpack.c.h.b16 %v274
        %v351 = vunpack.c.l.b16 %v275
        %v352 = vunpack.c.l.b16 %v276
        %v353 = vunpack.c.h.b16 %v276
        %v354 = vunpack.c.l.b16 %v277
        %v355 = vunpack.c.l.b16 %v278
        %v356 = vunpack.c.h.b16 %v278
        %v357 = vunpack.c.l.b16 %v279
        %v358 = vunpack.c.l.b16 %v280
        %v359 = vunpack.c.h.b16 %v280
        %v360 = vunpack.c.l.b16 %v281
        %v361 = vunpack.c.l.b16 %v282
        %v362 = vunpack.c.h.b16 %v282
        %v363 = vunpack.c.l.b16 %v283
        %v364 = vunpack.c.l.b16 %v284
        %v365 = vunpack.c.h.b16 %v284
        %v366 = vunpack.c.l.b16 %v285
        %v367 = vunpack.c.l.b16 %v286
        %v368 = vunpack.c.h.b16 %v286
        %v369 = vunpack.c.l.b16 %v287
        %v370 = vunpack.c.l.b16 %v288
        %v371 = vunpack.c.h.b16 %v288
        %v372 = vunpack.c.l.b16 %v289
        %v373 = vunpack.c.l.b16 %v290
        %v374 = vunpack.c.h.b16 %v290
        %v375 = vunpack.c.l.b16 %v291
        %v376 = vunpack.c.l.b16 %v292
        %v377 = vunpack.c.h.b16 %v292
        %v378 = vunpack.c.l.b16 %v293
        %v379 = vunpack.c.l.b16 %v294
        %v380 = vunpack.c.h.b16 %v294
        %v381 = vunpack.c.l.b16 %v295
        %v382 = vunpack.c.l.b16 %v296
        %v383 = vunpack.c.h.b16 %v296
        %v384 = vunpack.c.l.b16 %v297
        %v385 = vpack.c.b16 %v340, %v337
        %v386 = vpack.c.b16 %v341, %v338
        %v387 = vpack.c.b16 %v342, %v339
        %v388 = vpack.c.b16 %v346, %v343
        %v389 = vpack.c.b16 %v347, %v344
        %v390 = vpack.c.b16 %v348, %v345
        %v391 = vpack.c.b16 %v352, %v349
        %v392 = vpack.c.b16 %v353, %v350
        %v393 = vpack.c.b16 %v354, %v351
        %v394 = vpack.c.b16 %v358, %v355
        %v395 = vpack.c.b16 %v359, %v356
        %v396 = vpack.c.b16 %v360, %v357
        %v397 = vpack.c.b16 %v364, %v361
        %v398 = vpack.c.b16 %v365, %v362
        %v399 = vpack.c.b16 %v366, %v363
        %v400 = vpack.c.b16 %v370, %v367
        %v401 = vpack.c.b16 %v371, %v368
        %v402 = vpack.c.b16 %v372, %v369
        %v403 = vpack.c.b16 %v376, %v373
        %v404 = vpack.c.b16 %v377, %v374
        %v405 = vpack.c.b16 %v378, %v375
        %v406 = vpack.c.b16 %v382, %v379
        %v407 = vpack.c.b16 %v383, %v380
        %v408 = vpack.c.b16 %v384, %v381
        %433 = vmatpush.bf16.msra.mxu0 %v406
        %434 = vmatpush.bf16.msra.mxu0 %v403
        %435 = vmatpush.bf16.msra.mxu0 %v400
        %436 = vmatpush.bf16.msra.mxu0 %v397
        %437 = vmatpush.bf16.msra.mxu0 %v394
        %438 = vmatpush.bf16.msra.mxu0 %v391
        %439 = vmatpush.bf16.msra.mxu0 %v388
        %440 = vmatpush.bf16.msra.mxu0 %v385
        %441 = vmatmul.bf16.gmra.mxu0 0
        %v442 = vpop.f32.mrf.mxu0
        %v443 = vadd.f32 0.0, %v442
        %v444 = vpop.f32.mrf.mxu0
        %445 = vdwg.mxu0
        %446 = vmatpush.bf16.msra.mxu0 %v407
        %447 = vmatpush.bf16.msra.mxu0 %v404
        %448 = vmatpush.bf16.msra.mxu0 %v401
        %449 = vmatpush.bf16.msra.mxu0 %v398
        %450 = vmatpush.bf16.msra.mxu0 %v395
        %451 = vmatpush.bf16.msra.mxu0 %v392
        %452 = vmatpush.bf16.msra.mxu0 %v389
        %453 = vmatpush.bf16.msra.mxu0 %v386
        %454 = vmatmul.bf16.gmra.mxu0 0
        %v455 = vpop.f32.mrf.mxu0
        %v456 = vadd.f32 0.0, %v455
        %v457 = vpop.f32.mrf.mxu0
        %458 = vdwg.mxu0
        %459 = vmatpush.bf16.msra.mxu0 %v408
        %460 = vmatpush.bf16.msra.mxu0 %v405
        %461 = vmatpush.bf16.msra.mxu0 %v402
        %462 = vmatpush.bf16.msra.mxu0 %v399
        %463 = vmatpush.bf16.msra.mxu0 %v396
        %464 = vmatpush.bf16.msra.mxu0 %v393
        %465 = vmatpush.bf16.msra.mxu0 %v390
        %466 = vmatpush.bf16.msra.mxu0 %v387
        %467 = vmatmul.bf16.gmra.mxu0 0
        %v468 = vpop.f32.mrf.mxu0
        %v469 = vadd.f32 0.0, %v468
        %v470 = vpop.f32.mrf.mxu0
        %471 = vdwg.mxu0
        %v472 = vadd.f32 %v302, %v443
        %v473 = vxor.u32 %v472, 2147483648
        %v474 = vmul.f32 %v473, 1.442695
        %v475 = vpow.pop %v474
        %v476 = vadd.f32 %v475, 1.0
        %v477 = vrcp.pop %v476
        %v478 = vmul.f32 %v476, %v477
        %v479 = vsub.f32 1.0, %v478
        %v480 = vmul.f32 %v477, %v479
        %v481 = vadd.f32 %v477, %v480
        %vm482 = vweird.f32 %v476
        %vm483 = vweird.f32 %v477
        %vm484 = vmor %vm482, %vm483
        %v485 = vsel %vm484, %v477, %v481
        %v486 = vand.u32 2147483647, %v476
        %vm487 = vcmp.eq.f32.partialorder %v486, 8.507059e+37
        %v488 = vand.u32 %v476, 2147483648
        %v489 = vor.u32 1.1754944e-38, %v488
        %v490 = vsel %vm487, %v489, %v485
        %v491 = vmul.f32 1.0, %v490
        %v492 = vadd.f32 %v303, %v456
        %v493 = vxor.u32 %v492, 2147483648
        %v494 = vmul.f32 %v493, 1.442695
        %v495 = vpow.pop %v494
        %v496 = vadd.f32 %v495, 1.0
        %v497 = vrcp.pop %v496
        %v498 = vmul.f32 %v496, %v497
        %v499 = vsub.f32 1.0, %v498
        %v500 = vmul.f32 %v497, %v499
        %v501 = vadd.f32 %v497, %v500
        %vm502 = vweird.f32 %v496
        %vm503 = vweird.f32 %v497
        %vm504 = vmor %vm502, %vm503
        %v505 = vsel %vm504, %v497, %v501
        %v506 = vand.u32 2147483647, %v496
        %vm507 = vcmp.eq.f32.partialorder %v506, 8.507059e+37
        %v508 = vand.u32 %v496, 2147483648
        %v509 = vor.u32 1.1754944e-38, %v508
        %v510 = vsel %vm507, %v509, %v505
        %v511 = vmul.f32 1.0, %v510
        %v512 = vadd.f32 %v469, %v300
        %v513 = vmul.f32 %v491, %v512
        %v514 = vadd.f32 %v304, %v513
        %v515 = vtanh.pop %v514
        %v516 = vsub.f32 1.0, %v511
        %v517 = vmul.f32 %v516, %v515
        %v518 = vmul.f32 %v511, 0.0
        %v519 = vadd.f32 %v517, %v518
        %s520 = scalar_lea.vmem %s213, 24 [#allocation2]
        %v521 = vld [vmem:[%s520] sm:$0xff]
        %v522 = vld [vmem:[%s520 + $0x8] sm:$0xff]
        %v523 = vld [vmem:[%s520 + $0x10] sm:$0xff]
        %v524 = vpack.c.bf16 %v519, %v519
        %525 = vmatpush.bf16.msra.mxu0 %v406
        %526 = vmatpush.bf16.msra.mxu0 %v403
        %527 = vmatpush.bf16.msra.mxu0 %v400
        %528 = vmatpush.bf16.msra.mxu0 %v397
        %529 = vmatpush.bf16.msra.mxu0 %v394
        %530 = vmatpush.bf16.msra.mxu0 %v391
        %531 = vmatpush.bf16.msra.mxu0 %v388
        %532 = vmatpush.bf16.msra.mxu0 %v385
        %533 = vmatmul.bf16.gmra.mxu0 %v524
        %v534 = vpop.f32.mrf.mxu0
        %v535 = vadd.f32 0.0, %v534
        %v536 = vpop.f32.mrf.mxu0
        %537 = vdwg.mxu0
        %538 = vmatpush.bf16.msra.mxu0 %v407
        %539 = vmatpush.bf16.msra.mxu0 %v404
        %540 = vmatpush.bf16.msra.mxu0 %v401
        %541 = vmatpush.bf16.msra.mxu0 %v398
        %542 = vmatpush.bf16.msra.mxu0 %v395
        %543 = vmatpush.bf16.msra.mxu0 %v392
        %544 = vmatpush.bf16.msra.mxu0 %v389
        %545 = vmatpush.bf16.msra.mxu0 %v386
        %546 = vmatmul.bf16.gmra.mxu0 %v524
        %v547 = vpop.f32.mrf.mxu0
        %v548 = vadd.f32 0.0, %v547
        %v549 = vpop.f32.mrf.mxu0
        %550 = vdwg.mxu0
        %551 = vmatpush.bf16.msra.mxu0 %v408
        %552 = vmatpush.bf16.msra.mxu0 %v405
        %553 = vmatpush.bf16.msra.mxu0 %v402
        %554 = vmatpush.bf16.msra.mxu0 %v399
        %555 = vmatpush.bf16.msra.mxu0 %v396
        %556 = vmatpush.bf16.msra.mxu0 %v393
        %557 = vmatpush.bf16.msra.mxu0 %v390
        %558 = vmatpush.bf16.msra.mxu0 %v387
        %559 = vmatmul.bf16.gmra.mxu0 %v524
        %v560 = vpop.f32.mrf.mxu0
        %v561 = vadd.f32 0.0, %v560
        %v562 = vpop.f32.mrf.mxu0
        %563 = vdwg.mxu0
        %v564 = vadd.f32 %v521, %v535
        %v565 = vxor.u32 %v564, 2147483648
        %v566 = vmul.f32 %v565, 1.442695
        %v567 = vpow.pop %v566
        %v568 = vadd.f32 %v567, 1.0
        %v569 = vrcp.pop %v568
        %v570 = vmul.f32 %v568, %v569
        %v571 = vsub.f32 1.0, %v570
        %v572 = vmul.f32 %v569, %v571
        %v573 = vadd.f32 %v569, %v572
        %vm574 = vweird.f32 %v568
        %vm575 = vweird.f32 %v569
        %vm576 = vmor %vm574, %vm575
        %v577 = vsel %vm576, %v569, %v573
        %v578 = vand.u32 2147483647, %v568
        %vm579 = vcmp.eq.f32.partialorder %v578, 8.507059e+37
        %v580 = vand.u32 %v568, 2147483648
        %v581 = vor.u32 1.1754944e-38, %v580
        %v582 = vsel %vm579, %v581, %v577
        %v583 = vmul.f32 1.0, %v582
        %v584 = vadd.f32 %v522, %v548
        %v585 = vxor.u32 %v584, 2147483648
        %v586 = vmul.f32 %v585, 1.442695
        %v587 = vpow.pop %v586
        %v588 = vadd.f32 %v587, 1.0
        %v589 = vrcp.pop %v588
        %v590 = vmul.f32 %v588, %v589
        %v591 = vsub.f32 1.0, %v590
        %v592 = vmul.f32 %v589, %v591
        %v593 = vadd.f32 %v589, %v592
        %vm594 = vweird.f32 %v588
        %vm595 = vweird.f32 %v589
        %vm596 = vmor %vm594, %vm595
        %v597 = vsel %vm596, %v589, %v593
        %v598 = vand.u32 2147483647, %v588
        %vm599 = vcmp.eq.f32.partialorder %v598, 8.507059e+37
        %v600 = vand.u32 %v588, 2147483648
        %v601 = vor.u32 1.1754944e-38, %v600
        %v602 = vsel %vm599, %v601, %v597
        %v603 = vmul.f32 1.0, %v602
        %v604 = vadd.f32 %v561, %v300
        %v605 = vmul.f32 %v583, %v604
        %v606 = vadd.f32 %v523, %v605
        %v607 = vtanh.pop %v606
        %v608 = vsub.f32 1.0, %v603
        %v609 = vmul.f32 %v608, %v607
        %v610 = vmul.f32 %v603, %v519
        %v611 = vadd.f32 %v609, %v610
        %s612 = scalar_lea.vmem %s213, 48 [#allocation2]
        %v613 = vld [vmem:[%s612] sm:$0xff]
        %v614 = vld [vmem:[%s612 + $0x8] sm:$0xff]
        %v615 = vld [vmem:[%s612 + $0x10] sm:$0xff]
        %v616 = vpack.c.bf16 %v611, %v611
        %617 = vmatpush.bf16.msra.mxu0 %v406
        %618 = vmatpush.bf16.msra.mxu0 %v403
        %619 = vmatpush.bf16.msra.mxu0 %v400
        %620 = vmatpush.bf16.msra.mxu0 %v397
        %621 = vmatpush.bf16.msra.mxu0 %v394
        %622 = vmatpush.bf16.msra.mxu0 %v391
        %623 = vmatpush.bf16.msra.mxu0 %v388
        %624 = vmatpush.bf16.msra.mxu0 %v385
        %625 = vmatmul.bf16.gmra.mxu0 %v616
        %v626 = vpop.f32.mrf.mxu0
        %v627 = vadd.f32 0.0, %v626
        %v628 = vpop.f32.mrf.mxu0
        %629 = vdwg.mxu0
        %630 = vmatpush.bf16.msra.mxu0 %v407
        %631 = vmatpush.bf16.msra.mxu0 %v404
        %632 = vmatpush.bf16.msra.mxu0 %v401
        %633 = vmatpush.bf16.msra.mxu0 %v398
        %634 = vmatpush.bf16.msra.mxu0 %v395
        %635 = vmatpush.bf16.msra.mxu0 %v392
        %636 = vmatpush.bf16.msra.mxu0 %v389
        %637 = vmatpush.bf16.msra.mxu0 %v386
        %638 = vmatmul.bf16.gmra.mxu0 %v616
        %v639 = vpop.f32.mrf.mxu0
        %v640 = vadd.f32 0.0, %v639
        %v641 = vpop.f32.mrf.mxu0
        %642 = vdwg.mxu0
        %643 = vmatpush.bf16.msra.mxu0 %v408
        %644 = vmatpush.bf16.msra.mxu0 %v405
        %645 = vmatpush.bf16.msra.mxu0 %v402
        %646 = vmatpush.bf16.msra.mxu0 %v399
        %647 = vmatpush.bf16.msra.mxu0 %v396
        %648 = vmatpush.bf16.msra.mxu0 %v393
        %649 = vmatpush.bf16.msra.mxu0 %v390
        %650 = vmatpush.bf16.msra.mxu0 %v387
        %651 = vmatmul.bf16.gmra.mxu0 %v616
        %v652 = vpop.f32.mrf.mxu0
        %v653 = vadd.f32 0.0, %v652
        %v654 = vpop.f32.mrf.mxu0
        %655 = vdwg.mxu0
        %v656 = vadd.f32 %v613, %v627
        %v657 = vxor.u32 %v656, 2147483648
        %v658 = vmul.f32 %v657, 1.442695
        %v659 = vpow.pop %v658
        %v660 = vadd.f32 %v659, 1.0
        %v661 = vrcp.pop %v660
        %v662 = vmul.f32 %v660, %v661
        %v663 = vsub.f32 1.0, %v662
        %v664 = vmul.f32 %v661, %v663
        %v665 = vadd.f32 %v661, %v664
        %vm666 = vweird.f32 %v660
        %vm667 = vweird.f32 %v661
        %vm668 = vmor %vm666, %vm667
        %v669 = vsel %vm668, %v661, %v665
        %v670 = vand.u32 2147483647, %v660
        %vm671 = vcmp.eq.f32.partialorder %v670, 8.507059e+37
        %v672 = vand.u32 %v660, 2147483648
        %v673 = vor.u32 1.1754944e-38, %v672
        %v674 = vsel %vm671, %v673, %v669
        %v675 = vmul.f32 1.0, %v674
        %v676 = vadd.f32 %v614, %v640
        %v677 = vxor.u32 %v676, 2147483648
        %v678 = vmul.f32 %v677, 1.442695
        %v679 = vpow.pop %v678
        %v680 = vadd.f32 %v679, 1.0
        %v681 = vrcp.pop %v680
        %v682 = vmul.f32 %v680, %v681
        %v683 = vsub.f32 1.0, %v682
        %v684 = vmul.f32 %v681, %v683
        %v685 = vadd.f32 %v681, %v684
        %vm686 = vweird.f32 %v680
        %vm687 = vweird.f32 %v681
        %vm688 = vmor %vm686, %vm687
        %v689 = vsel %vm688, %v681, %v685
        %v690 = vand.u32 2147483647, %v680
        %vm691 = vcmp.eq.f32.partialorder %v690, 8.507059e+37
        %v692 = vand.u32 %v680, 2147483648
        %v693 = vor.u32 1.1754944e-38, %v692
        %v694 = vsel %vm691, %v693, %v689
        %v695 = vmul.f32 1.0, %v694
        %v696 = vadd.f32 %v653, %v300
        %v697 = vmul.f32 %v675, %v696
        %v698 = vadd.f32 %v615, %v697
        %v699 = vtanh.pop %v698
        %v700 = vsub.f32 1.0, %v695
        %v701 = vmul.f32 %v700, %v699
        %v702 = vmul.f32 %v695, %v611
        %v703 = vadd.f32 %v701, %v702
        %s704 = scalar_lea.vmem %s213, 72 [#allocation2]
        %v705 = vld [vmem:[%s704] sm:$0xff]
        %v706 = vld [vmem:[%s704 + $0x8] sm:$0xff]
        %v707 = vld [vmem:[%s704 + $0x10] sm:$0xff]
        %v708 = vpack.c.bf16 %v703, %v703
        %709 = vmatpush.bf16.msra.mxu0 %v406
        %710 = vmatpush.bf16.msra.mxu0 %v403
        %711 = vmatpush.bf16.msra.mxu0 %v400
        %712 = vmatpush.bf16.msra.mxu0 %v397
        %713 = vmatpush.bf16.msra.mxu0 %v394
        %714 = vmatpush.bf16.msra.mxu0 %v391
        %715 = vmatpush.bf16.msra.mxu0 %v388
        %716 = vmatpush.bf16.msra.mxu0 %v385
        %717 = vmatmul.bf16.gmra.mxu0 %v708
        %v718 = vpop.f32.mrf.mxu0
        %v719 = vadd.f32 0.0, %v718
        %v720 = vpop.f32.mrf.mxu0
        %721 = vdwg.mxu0
        %722 = vmatpush.bf16.msra.mxu0 %v407
        %723 = vmatpush.bf16.msra.mxu0 %v404
        %724 = vmatpush.bf16.msra.mxu0 %v401
        %725 = vmatpush.bf16.msra.mxu0 %v398
        %726 = vmatpush.bf16.msra.mxu0 %v395
        %727 = vmatpush.bf16.msra.mxu0 %v392
        %728 = vmatpush.bf16.msra.mxu0 %v389
        %729 = vmatpush.bf16.msra.mxu0 %v386
        %730 = vmatmul.bf16.gmra.mxu0 %v708
        %v731 = vpop.f32.mrf.mxu0
        %v732 = vadd.f32 0.0, %v731
        %v733 = vpop.f32.mrf.mxu0
        %734 = vdwg.mxu0
        %735 = vmatpush.bf16.msra.mxu0 %v408
        %736 = vmatpush.bf16.msra.mxu0 %v405
        %737 = vmatpush.bf16.msra.mxu0 %v402
        %738 = vmatpush.bf16.msra.mxu0 %v399
        %739 = vmatpush.bf16.msra.mxu0 %v396
        %740 = vmatpush.bf16.msra.mxu0 %v393
        %741 = vmatpush.bf16.msra.mxu0 %v390
        %742 = vmatpush.bf16.msra.mxu0 %v387
        %743 = vmatmul.bf16.gmra.mxu0 %v708
        %v744 = vpop.f32.mrf.mxu0
        %v745 = vadd.f32 0.0, %v744
        %v746 = vpop.f32.mrf.mxu0
        %747 = vdwg.mxu0
        %v748 = vadd.f32 %v705, %v719
        %v749 = vxor.u32 %v748, 2147483648
        %v750 = vmul.f32 %v749, 1.442695
        %v751 = vpow.pop %v750
        %v752 = vadd.f32 %v751, 1.0
        %v753 = vrcp.pop %v752
        %v754 = vmul.f32 %v752, %v753
        %v755 = vsub.f32 1.0, %v754
        %v756 = vmul.f32 %v753, %v755
        %v757 = vadd.f32 %v753, %v756
        %vm758 = vweird.f32 %v752
        %vm759 = vweird.f32 %v753
        %vm760 = vmor %vm758, %vm759
        %v761 = vsel %vm760, %v753, %v757
        %v762 = vand.u32 2147483647, %v752
        %vm763 = vcmp.eq.f32.partialorder %v762, 8.507059e+37
        %v764 = vand.u32 %v752, 2147483648
        %v765 = vor.u32 1.1754944e-38, %v764
        %v766 = vsel %vm763, %v765, %v761
        %v767 = vmul.f32 1.0, %v766
        %v768 = vadd.f32 %v706, %v732
        %v769 = vxor.u32 %v768, 2147483648
        %v770 = vmul.f32 %v769, 1.442695
        %v771 = vpow.pop %v770
        %v772 = vadd.f32 %v771, 1.0
        %v773 = vrcp.pop %v772
        %v774 = vmul.f32 %v772, %v773
        %v775 = vsub.f32 1.0, %v774
        %v776 = vmul.f32 %v773, %v775
        %v777 = vadd.f32 %v773, %v776
        %vm778 = vweird.f32 %v772
        %vm779 = vweird.f32 %v773
        %vm780 = vmor %vm778, %vm779
        %v781 = vsel %vm780, %v773, %v777
        %v782 = vand.u32 2147483647, %v772
        %vm783 = vcmp.eq.f32.partialorder %v782, 8.507059e+37
        %v784 = vand.u32 %v772, 2147483648
        %v785 = vor.u32 1.1754944e-38, %v784
        %v786 = vsel %vm783, %v785, %v781
        %v787 = vmul.f32 1.0, %v786
        %v788 = vadd.f32 %v745, %v300
        %v789 = vmul.f32 %v767, %v788
        %v790 = vadd.f32 %v707, %v789
        %v791 = vtanh.pop %v790
        %v792 = vsub.f32 1.0, %v787
        %v793 = vmul.f32 %v792, %v791
        %v794 = vmul.f32 %v787, %v703
        %v795 = vadd.f32 %v793, %v794
        %s796 = scalar_lea.vmem %s213, 96 [#allocation2]
        %v797 = vld [vmem:[%s796] sm:$0xff]
        %v798 = vld [vmem:[%s796 + $0x8] sm:$0xff]
        %v799 = vld [vmem:[%s796 + $0x10] sm:$0xff]
        %v800 = vpack.c.bf16 %v795, %v795
        %801 = vmatpush.bf16.msra.mxu0 %v406
        %802 = vmatpush.bf16.msra.mxu0 %v403
        %803 = vmatpush.bf16.msra.mxu0 %v400
        %804 = vmatpush.bf16.msra.mxu0 %v397
        %805 = vmatpush.bf16.msra.mxu0 %v394
        %806 = vmatpush.bf16.msra.mxu0 %v391
        %807 = vmatpush.bf16.msra.mxu0 %v388
        %808 = vmatpush.bf16.msra.mxu0 %v385
        %809 = vmatmul.bf16.gmra.mxu0 %v800
        %v810 = vpop.f32.mrf.mxu0
        %v811 = vadd.f32 0.0, %v810
        %v812 = vpop.f32.mrf.mxu0
        %813 = vdwg.mxu0
        %814 = vmatpush.bf16.msra.mxu0 %v407
        %815 = vmatpush.bf16.msra.mxu0 %v404
        %816 = vmatpush.bf16.msra.mxu0 %v401
        %817 = vmatpush.bf16.msra.mxu0 %v398
        %818 = vmatpush.bf16.msra.mxu0 %v395
        %819 = vmatpush.bf16.msra.mxu0 %v392
        %820 = vmatpush.bf16.msra.mxu0 %v389
        %821 = vmatpush.bf16.msra.mxu0 %v386
        %822 = vmatmul.bf16.gmra.mxu0 %v800
        %v823 = vpop.f32.mrf.mxu0
        %v824 = vadd.f32 0.0, %v823
        %v825 = vpop.f32.mrf.mxu0
        %826 = vdwg.mxu0
        %827 = vmatpush.bf16.msra.mxu0 %v408
        %828 = vmatpush.bf16.msra.mxu0 %v405
        %829 = vmatpush.bf16.msra.mxu0 %v402
        %830 = vmatpush.bf16.msra.mxu0 %v399
        %831 = vmatpush.bf16.msra.mxu0 %v396
        %832 = vmatpush.bf16.msra.mxu0 %v393
        %833 = vmatpush.bf16.msra.mxu0 %v390
        %834 = vmatpush.bf16.msra.mxu0 %v387
        %835 = vmatmul.bf16.gmra.mxu0 %v800
        %v836 = vpop.f32.mrf.mxu0
        %v837 = vadd.f32 0.0, %v836
        %v838 = vpop.f32.mrf.mxu0
        %839 = vdwg.mxu0
        %v840 = vadd.f32 %v797, %v811
        %v841 = vxor.u32 %v840, 2147483648
        %v842 = vmul.f32 %v841, 1.442695
        %v843 = vpow.pop %v842
        %v844 = vadd.f32 %v843, 1.0
        %v845 = vrcp.pop %v844
        %v846 = vmul.f32 %v844, %v845
        %v847 = vsub.f32 1.0, %v846
        %v848 = vmul.f32 %v845, %v847
        %v849 = vadd.f32 %v845, %v848
        %vm850 = vweird.f32 %v844
        %vm851 = vweird.f32 %v845
        %vm852 = vmor %vm850, %vm851
        %v853 = vsel %vm852, %v845, %v849
        %v854 = vand.u32 2147483647, %v844
        %vm855 = vcmp.eq.f32.partialorder %v854, 8.507059e+37
        %v856 = vand.u32 %v844, 2147483648
        %v857 = vor.u32 1.1754944e-38, %v856
        %v858 = vsel %vm855, %v857, %v853
        %v859 = vmul.f32 1.0, %v858
        %v860 = vadd.f32 %v798, %v824
        %v861 = vxor.u32 %v860, 2147483648
        %v862 = vmul.f32 %v861, 1.442695
        %v863 = vpow.pop %v862
        %v864 = vadd.f32 %v863, 1.0
        %v865 = vrcp.pop %v864
        %v866 = vmul.f32 %v864, %v865
        %v867 = vsub.f32 1.0, %v866
        %v868 = vmul.f32 %v865, %v867
        %v869 = vadd.f32 %v865, %v868
        %vm870 = vweird.f32 %v864
        %vm871 = vweird.f32 %v865
        %vm872 = vmor %vm870, %vm871
        %v873 = vsel %vm872, %v865, %v869
        %v874 = vand.u32 2147483647, %v864
        %vm875 = vcmp.eq.f32.partialorder %v874, 8.507059e+37
        %v876 = vand.u32 %v864, 2147483648
        %v877 = vor.u32 1.1754944e-38, %v876
        %v878 = vsel %vm875, %v877, %v873
        %v879 = vmul.f32 1.0, %v878
        %v880 = vadd.f32 %v837, %v300
        %v881 = vmul.f32 %v859, %v880
        %v882 = vadd.f32 %v799, %v881
        %v883 = vtanh.pop %v882
        %v884 = vsub.f32 1.0, %v879
        %v885 = vmul.f32 %v884, %v883
        %v886 = vmul.f32 %v879, %v795
        %v887 = vadd.f32 %v885, %v886
        %s888 = scalar_lea.vmem %s213, 120 [#allocation2]
        %v889 = vld [vmem:[%s888] sm:$0xff]
        %v890 = vld [vmem:[%s888 + $0x8] sm:$0xff]
        %v891 = vld [vmem:[%s888 + $0x10] sm:$0xff]
        %v892 = vpack.c.bf16 %v887, %v887
        %893 = vmatpush.bf16.msra.mxu0 %v406
        %894 = vmatpush.bf16.msra.mxu0 %v403
        %895 = vmatpush.bf16.msra.mxu0 %v400
        %896 = vmatpush.bf16.msra.mxu0 %v397
        %897 = vmatpush.bf16.msra.mxu0 %v394
        %898 = vmatpush.bf16.msra.mxu0 %v391
        %899 = vmatpush.bf16.msra.mxu0 %v388
        %900 = vmatpush.bf16.msra.mxu0 %v385
        %901 = vmatmul.bf16.gmra.mxu0 %v892
        %v902 = vpop.f32.mrf.mxu0
        %v903 = vadd.f32 0.0, %v902
        %v904 = vpop.f32.mrf.mxu0
        %905 = vdwg.mxu0
        %906 = vmatpush.bf16.msra.mxu0 %v407
        %907 = vmatpush.bf16.msra.mxu0 %v404
        %908 = vmatpush.bf16.msra.mxu0 %v401
        %909 = vmatpush.bf16.msra.mxu0 %v398
        %910 = vmatpush.bf16.msra.mxu0 %v395
        %911 = vmatpush.bf16.msra.mxu0 %v392
        %912 = vmatpush.bf16.msra.mxu0 %v389
        %913 = vmatpush.bf16.msra.mxu0 %v386
        %914 = vmatmul.bf16.gmra.mxu0 %v892
        %v915 = vpop.f32.mrf.mxu0
        %v916 = vadd.f32 0.0, %v915
        %v917 = vpop.f32.mrf.mxu0
        %918 = vdwg.mxu0
        %919 = vmatpush.bf16.msra.mxu0 %v408
        %920 = vmatpush.bf16.msra.mxu0 %v405
        %921 = vmatpush.bf16.msra.mxu0 %v402
        %922 = vmatpush.bf16.msra.mxu0 %v399
        %923 = vmatpush.bf16.msra.mxu0 %v396
        %924 = vmatpush.bf16.msra.mxu0 %v393
        %925 = vmatpush.bf16.msra.mxu0 %v390
        %926 = vmatpush.bf16.msra.mxu0 %v387
        %927 = vmatmul.bf16.gmra.mxu0 %v892
        %v928 = vpop.f32.mrf.mxu0
        %v929 = vadd.f32 0.0, %v928
        %v930 = vpop.f32.mrf.mxu0
        %931 = vdwg.mxu0
        %v932 = vadd.f32 %v889, %v903
        %v933 = vxor.u32 %v932, 2147483648
        %v934 = vmul.f32 %v933, 1.442695
        %v935 = vpow.pop %v934
        %v936 = vadd.f32 %v935, 1.0
        %v937 = vrcp.pop %v936
        %v938 = vmul.f32 %v936, %v937
        %v939 = vsub.f32 1.0, %v938
        %v940 = vmul.f32 %v937, %v939
        %v941 = vadd.f32 %v937, %v940
        %vm942 = vweird.f32 %v936
        %vm943 = vweird.f32 %v937
        %vm944 = vmor %vm942, %vm943
        %v945 = vsel %vm944, %v937, %v941
        %v946 = vand.u32 2147483647, %v936
        %vm947 = vcmp.eq.f32.partialorder %v946, 8.507059e+37
        %v948 = vand.u32 %v936, 2147483648
        %v949 = vor.u32 1.1754944e-38, %v948
        %v950 = vsel %vm947, %v949, %v945
        %v951 = vmul.f32 1.0, %v950
        %v952 = vadd.f32 %v890, %v916
        %v953 = vxor.u32 %v952, 2147483648
        %v954 = vmul.f32 %v953, 1.442695
        %v955 = vpow.pop %v954
        %v956 = vadd.f32 %v955, 1.0
        %v957 = vrcp.pop %v956
        %v958 = vmul.f32 %v956, %v957
        %v959 = vsub.f32 1.0, %v958
        %v960 = vmul.f32 %v957, %v959
        %v961 = vadd.f32 %v957, %v960
        %vm962 = vweird.f32 %v956
        %vm963 = vweird.f32 %v957
        %vm964 = vmor %vm962, %vm963
        %v965 = vsel %vm964, %v957, %v961
        %v966 = vand.u32 2147483647, %v956
        %vm967 = vcmp.eq.f32.partialorder %v966, 8.507059e+37
        %v968 = vand.u32 %v956, 2147483648
        %v969 = vor.u32 1.1754944e-38, %v968
        %v970 = vsel %vm967, %v969, %v965
        %v971 = vmul.f32 1.0, %v970
        %v972 = vadd.f32 %v929, %v300
        %v973 = vmul.f32 %v951, %v972
        %v974 = vadd.f32 %v891, %v973
        %v975 = vtanh.pop %v974
        %v976 = vsub.f32 1.0, %v971
        %v977 = vmul.f32 %v976, %v975
        %v978 = vmul.f32 %v971, %v887
        %v979 = vadd.f32 %v977, %v978
        %s980 = scalar_lea.vmem %s213, 144 [#allocation2]
        %v981 = vld [vmem:[%s980] sm:$0xff]
        %v982 = vld [vmem:[%s980 + $0x8] sm:$0xff]
        %v983 = vld [vmem:[%s980 + $0x10] sm:$0xff]
        %v984 = vpack.c.bf16 %v979, %v979
        %985 = vmatpush.bf16.msra.mxu0 %v406
        %986 = vmatpush.bf16.msra.mxu0 %v403
        %987 = vmatpush.bf16.msra.mxu0 %v400
        %988 = vmatpush.bf16.msra.mxu0 %v397
        %989 = vmatpush.bf16.msra.mxu0 %v394
        %990 = vmatpush.bf16.msra.mxu0 %v391
        %991 = vmatpush.bf16.msra.mxu0 %v388
        %992 = vmatpush.bf16.msra.mxu0 %v385
        %993 = vmatmul.bf16.gmra.mxu0 %v984
        %v994 = vpop.f32.mrf.mxu0
        %v995 = vadd.f32 0.0, %v994
        %v996 = vpop.f32.mrf.mxu0
        %997 = vdwg.mxu0
        %998 = vmatpush.bf16.msra.mxu0 %v407
        %999 = vmatpush.bf16.msra.mxu0 %v404
        %1000 = vmatpush.bf16.msra.mxu0 %v401
        %1001 = vmatpush.bf16.msra.mxu0 %v398
        %1002 = vmatpush.bf16.msra.mxu0 %v395
        %1003 = vmatpush.bf16.msra.mxu0 %v392
        %1004 = vmatpush.bf16.msra.mxu0 %v389
        %1005 = vmatpush.bf16.msra.mxu0 %v386
        %1006 = vmatmul.bf16.gmra.mxu0 %v984
        %v1007 = vpop.f32.mrf.mxu0
        %v1008 = vadd.f32 0.0, %v1007
        %v1009 = vpop.f32.mrf.mxu0
        %1010 = vdwg.mxu0
        %1011 = vmatpush.bf16.msra.mxu0 %v408
        %1012 = vmatpush.bf16.msra.mxu0 %v405
        %1013 = vmatpush.bf16.msra.mxu0 %v402
        %1014 = vmatpush.bf16.msra.mxu0 %v399
        %1015 = vmatpush.bf16.msra.mxu0 %v396
        %1016 = vmatpush.bf16.msra.mxu0 %v393
        %1017 = vmatpush.bf16.msra.mxu0 %v390
        %1018 = vmatpush.bf16.msra.mxu0 %v387
        %1019 = vmatmul.bf16.gmra.mxu0 %v984
        %v1020 = vpop.f32.mrf.mxu0
        %v1021 = vadd.f32 0.0, %v1020
        %v1022 = vpop.f32.mrf.mxu0
        %1023 = vdwg.mxu0
        %v1024 = vadd.f32 %v981, %v995
        %v1025 = vxor.u32 %v1024, 2147483648
        %v1026 = vmul.f32 %v1025, 1.442695
        %v1027 = vpow.pop %v1026
        %v1028 = vadd.f32 %v1027, 1.0
        %v1029 = vrcp.pop %v1028
        %v1030 = vmul.f32 %v1028, %v1029
        %v1031 = vsub.f32 1.0, %v1030
        %v1032 = vmul.f32 %v1029, %v1031
        %v1033 = vadd.f32 %v1029, %v1032
        %vm1034 = vweird.f32 %v1028
        %vm1035 = vweird.f32 %v1029
        %vm1036 = vmor %vm1034, %vm1035
        %v1037 = vsel %vm1036, %v1029, %v1033
        %v1038 = vand.u32 2147483647, %v1028
        %vm1039 = vcmp.eq.f32.partialorder %v1038, 8.507059e+37
        %v1040 = vand.u32 %v1028, 2147483648
        %v1041 = vor.u32 1.1754944e-38, %v1040
        %v1042 = vsel %vm1039, %v1041, %v1037
        %v1043 = vmul.f32 1.0, %v1042
        %v1044 = vadd.f32 %v982, %v1008
        %v1045 = vxor.u32 %v1044, 2147483648
        %v1046 = vmul.f32 %v1045, 1.442695
        %v1047 = vpow.pop %v1046
        %v1048 = vadd.f32 %v1047, 1.0
        %v1049 = vrcp.pop %v1048
        %v1050 = vmul.f32 %v1048, %v1049
        %v1051 = vsub.f32 1.0, %v1050
        %v1052 = vmul.f32 %v1049, %v1051
        %v1053 = vadd.f32 %v1049, %v1052
        %vm1054 = vweird.f32 %v1048
        %vm1055 = vweird.f32 %v1049
        %vm1056 = vmor %vm1054, %vm1055
        %v1057 = vsel %vm1056, %v1049, %v1053
        %v1058 = vand.u32 2147483647, %v1048
        %vm1059 = vcmp.eq.f32.partialorder %v1058, 8.507059e+37
        %v1060 = vand.u32 %v1048, 2147483648
        %v1061 = vor.u32 1.1754944e-38, %v1060
        %v1062 = vsel %vm1059, %v1061, %v1057
        %v1063 = vmul.f32 1.0, %v1062
        %v1064 = vadd.f32 %v1021, %v300
        %v1065 = vmul.f32 %v1043, %v1064
        %v1066 = vadd.f32 %v983, %v1065
        %v1067 = vtanh.pop %v1066
        %v1068 = vsub.f32 1.0, %v1063
        %v1069 = vmul.f32 %v1068, %v1067
        %v1070 = vmul.f32 %v1063, %v979
        %v1071 = vadd.f32 %v1069, %v1070
        %s1072 = scalar_lea.vmem %s213, 168 [#allocation2]
        %v1073 = vld [vmem:[%s1072] sm:$0xff]
        %v1074 = vld [vmem:[%s1072 + $0x8] sm:$0xff]
        %v1075 = vld [vmem:[%s1072 + $0x10] sm:$0xff]
        %v1076 = vpack.c.bf16 %v1071, %v1071
        %1077 = vmatpush.bf16.msra.mxu0 %v406
        %1078 = vmatpush.bf16.msra.mxu0 %v403
        %1079 = vmatpush.bf16.msra.mxu0 %v400
        %1080 = vmatpush.bf16.msra.mxu0 %v397
        %1081 = vmatpush.bf16.msra.mxu0 %v394
        %1082 = vmatpush.bf16.msra.mxu0 %v391
        %1083 = vmatpush.bf16.msra.mxu0 %v388
        %1084 = vmatpush.bf16.msra.mxu0 %v385
        %1085 = vmatmul.bf16.gmra.mxu0 %v1076
        %v1086 = vpop.f32.mrf.mxu0
        %v1087 = vadd.f32 0.0, %v1086
        %v1088 = vpop.f32.mrf.mxu0
        %1089 = vdwg.mxu0
        %1090 = vmatpush.bf16.msra.mxu0 %v407
        %1091 = vmatpush.bf16.msra.mxu0 %v404
        %1092 = vmatpush.bf16.msra.mxu0 %v401
        %1093 = vmatpush.bf16.msra.mxu0 %v398
        %1094 = vmatpush.bf16.msra.mxu0 %v395
        %1095 = vmatpush.bf16.msra.mxu0 %v392
        %1096 = vmatpush.bf16.msra.mxu0 %v389
        %1097 = vmatpush.bf16.msra.mxu0 %v386
        %1098 = vmatmul.bf16.gmra.mxu0 %v1076
        %v1099 = vpop.f32.mrf.mxu0
        %v1100 = vadd.f32 0.0, %v1099
        %v1101 = vpop.f32.mrf.mxu0
        %1102 = vdwg.mxu0
        %1103 = vmatpush.bf16.msra.mxu0 %v408
        %1104 = vmatpush.bf16.msra.mxu0 %v405
        %1105 = vmatpush.bf16.msra.mxu0 %v402
        %1106 = vmatpush.bf16.msra.mxu0 %v399
        %1107 = vmatpush.bf16.msra.mxu0 %v396
        %1108 = vmatpush.bf16.msra.mxu0 %v393
        %1109 = vmatpush.bf16.msra.mxu0 %v390
        %1110 = vmatpush.bf16.msra.mxu0 %v387
        %1111 = vmatmul.bf16.gmra.mxu0 %v1076
        %v1112 = vpop.f32.mrf.mxu0
        %v1113 = vadd.f32 0.0, %v1112
        %v1114 = vpop.f32.mrf.mxu0
        %1115 = vdwg.mxu0
        %v1116 = vadd.f32 %v1073, %v1087
        %v1117 = vxor.u32 %v1116, 2147483648
        %v1118 = vmul.f32 %v1117, 1.442695
        %v1119 = vpow.pop %v1118
        %v1120 = vadd.f32 %v1119, 1.0
        %v1121 = vrcp.pop %v1120
        %v1122 = vmul.f32 %v1120, %v1121
        %v1123 = vsub.f32 1.0, %v1122
        %v1124 = vmul.f32 %v1121, %v1123
        %v1125 = vadd.f32 %v1121, %v1124
        %vm1126 = vweird.f32 %v1120
        %vm1127 = vweird.f32 %v1121
        %vm1128 = vmor %vm1126, %vm1127
        %v1129 = vsel %vm1128, %v1121, %v1125
        %v1130 = vand.u32 2147483647, %v1120
        %vm1131 = vcmp.eq.f32.partialorder %v1130, 8.507059e+37
        %v1132 = vand.u32 %v1120, 2147483648
        %v1133 = vor.u32 1.1754944e-38, %v1132
        %v1134 = vsel %vm1131, %v1133, %v1129
        %v1135 = vmul.f32 1.0, %v1134
        %v1136 = vadd.f32 %v1074, %v1100
        %v1137 = vxor.u32 %v1136, 2147483648
        %v1138 = vmul.f32 %v1137, 1.442695
        %v1139 = vpow.pop %v1138
        %v1140 = vadd.f32 %v1139, 1.0
        %v1141 = vrcp.pop %v1140
        %v1142 = vmul.f32 %v1140, %v1141
        %v1143 = vsub.f32 1.0, %v1142
        %v1144 = vmul.f32 %v1141, %v1143
        %v1145 = vadd.f32 %v1141, %v1144
        %vm1146 = vweird.f32 %v1140
        %vm1147 = vweird.f32 %v1141
        %vm1148 = vmor %vm1146, %vm1147
        %v1149 = vsel %vm1148, %v1141, %v1145
        %v1150 = vand.u32 2147483647, %v1140
        %vm1151 = vcmp.eq.f32.partialorder %v1150, 8.507059e+37
        %v1152 = vand.u32 %v1140, 2147483648
        %v1153 = vor.u32 1.1754944e-38, %v1152
        %v1154 = vsel %vm1151, %v1153, %v1149
        %v1155 = vmul.f32 1.0, %v1154
        %v1156 = vadd.f32 %v1113, %v300
        %v1157 = vmul.f32 %v1135, %v1156
        %v1158 = vadd.f32 %v1075, %v1157
        %v1159 = vtanh.pop %v1158
        %v1160 = vsub.f32 1.0, %v1155
        %v1161 = vmul.f32 %v1160, %v1159
        %v1162 = vmul.f32 %v1155, %v1071
        %v1163 = vadd.f32 %v1161, %v1162
        %1164 = vst [vmem:[%s264] sm:$0xff] %v1163
        %s1165 = sand.u32 %s109, 1
        %s1166 = scalar_lea.sflag [#allocation4], %s1165
        %s1167 = sand.u32 %s109, 1
        %s1168 = smul.addr %s1167, 8
        %s1169 = scalar_lea.vmem [#allocation8], %s1168
        // Predicated region
        $region45: #{tpu_custom_call.1} parent=31 // pred_check
          %p1170 = pneg %p119
        $region46: #{tpu_custom_call.1} parent=31 // pred_check_branch
          %1172 = sbr.rel (%p1170) target = $region48
        $region47: #{tpu_custom_call.1} parent=31 // pred_region
          %1174 = vsyncadd %s1166, 0
          %s1175 = smul.addr %s23, 8
          %s1176 = scalar_lea.hbm %s3, %s1175
          %s1178 = sshll.u32 %s1169, 4
          %s1179 = int_to_ptr.vmem [resolvable:$true] %s1178
          %s1180 = sshll.u32 %s1176, 4
          %s1181 = int_to_ptr.hbm [resolvable:$true] %s1180
          %1183 = dma.vmem_to_hbm [thread:$0]  %s1179, 128, %s1181, %s1166
        $region48: #{tpu_custom_call.1} parent=31 // pred_fallthru
          _
      $region32: #{tpu_custom_call.1} parent=5 // pred_fallthru
        _
      %p1184 = scmp.le.s32.totalorder 2, %s18
      // Predicated region
      $region49: #{tpu_custom_call.1} parent=5 // pred_check
        %p1185 = pneg %p1184
      $region50: #{tpu_custom_call.1} parent=5 // pred_check_branch
        %1187 = sbr.rel (%p1185) target = $region52
      $region51: #{tpu_custom_call.1} parent=5 // pred_region
        %s1188 = ssub.s32 %s18, 2
        // Predicated region
        $region53: #{tpu_custom_call.1} parent=51 // pred_check
          %p1189 = pneg %p125
        $region54: #{tpu_custom_call.1} parent=51 // pred_check_branch
          %1191 = sbr.rel (%p1189) target = $region56
        $region55: #{tpu_custom_call.1} parent=51 // pred_region
          %s1192 = sand.u32 %s110, 1
          %s1193 = scalar_lea.sflag [#allocation4], %s1192
          %s1194 = sand.u32 %s110, 1
          %s1195 = smul.addr %s1194, 8
          %s1196 = scalar_lea.vmem [#allocation8], %s1195
          %1198 = dma.done %s1193, 128
        $region56: #{tpu_custom_call.1} parent=51 // pred_fallthru
          _
      $region52: #{tpu_custom_call.1} parent=5 // pred_fallthru
        _
    $region6: #{tpu_custom_call.1} parent=1 // loop_footer
      %s22 = sadd.s32 1, %s18
    $region7: #{tpu_custom_call.1} parent=1 // loop_footer_branch
      %17 = sbr.rel target = $region3
    $region8: #{tpu_custom_call.1} parent=1 // loop_exit
      _
    %1199 = vsyncpa [#allocation3], 1
    %s1200 = scalar_lea.sflag [#allocation3], 1
    %1201 = vsyncpa %s1200, 1
    %1202 = vsyncpa [#allocation6], 1
    %s1203 = scalar_lea.sflag [#allocation6], 1
    %1204 = vsyncpa %s1203, 1
    %1205 = vsyncpa [#allocation4], 1
    %s1206 = scalar_lea.sflag [#allocation4], 1
    %1207 = vsyncpa %s1206, 1

</llo_original>
